<compile_context>
chip_gen: v5e
topology: v5e:2x2
jax: 0.10.0
libtpu: 0.0.40
codegen_flags: <defaults>
</compile_context>

<pallas_src>
import jax
import jax.numpy as jnp
from jax.experimental import pallas as pl
from jax.experimental.pallas import tpu as pltpu

KERNEL_SIZE = 4  # all convs / pool use kernel=4, stride=1, padding=0

_VMEM_SPEC = pl.BlockSpec(memory_space=pltpu.MemorySpace.VMEM)


# ---------------------------------------------------------------------------
# Fused forward kernel.  All activations are per-batch 2D (L, C) values kept
# on-chip; weights arrive pre-reshaped to im2col layout (K*Cin, Cout).
# ---------------------------------------------------------------------------
def _fused_audio_encoder_kernel(
        x_ref,
        w1_ref, b1_ref, w2_ref, b2_ref, w3_ref, b3_ref,
        g_ref, beta_ref,
        d1w_ref, d1b_ref, d2w_ref, d2b_ref, d3w_ref, d3b_ref,
        o_ref):
    K = KERNEL_SIZE
    N = x_ref.shape[0]

    # ---- Conv1d ('valid', stride 1) as one im2col matmul, batch folded into M.
    def conv_all(xs, w_ref, b_ref):
        L_in, _ = xs[0].shape
        L_out = L_in - K + 1
        # im2col row l = [x[l+0,:], x[l+1,:], ..., x[l+K-1,:]]  -> (L_out, K*Cin)
        patches = [
            jnp.concatenate([xb[k:k + L_out, :] for k in range(K)], axis=1)
            for xb in xs
        ]
        big = jnp.concatenate(patches, axis=0)                  # (N*L_out, K*Cin)
        y = jnp.dot(big, w_ref[...], preferred_element_type=jnp.float32)
        y = y + b_ref[...]                                      # (1, Cout) broadcast
        return [y[i * L_out:(i + 1) * L_out, :] for i in range(len(xs))]

    # ---- ConvTranspose1d (stride=1, padding=0) == full conv with pre-flipped taps.
    def deconv_all(xs, w_ref, b_ref):
        _, C = xs[0].shape
        z = jnp.zeros((K - 1, C), jnp.float32)
        xs_pad = [jnp.concatenate([z, xb, z], axis=0) for xb in xs]
        return conv_all(xs_pad, w_ref, b_ref)

    # ---- MaxPool1d(K, stride=1): track value + in-window argmax offset.
    def pool_one(xb):
        L_in, C = xb.shape
        Lp = L_in - K + 1
        best_v = xb[0:Lp, :]
        best_k = jnp.zeros((Lp, C), jnp.int32)
        for k in range(1, K):                       # static, unrolled
            cand = xb[k:k + Lp, :]
            take = cand > best_v
            best_k = jnp.where(take, k, best_k)
            best_v = jnp.where(take, cand, best_v)
        return best_v, best_k

    # ---- MaxUnpool1d: K shifted selects over the whole (Lp, C) tile.
    # Duplicate argmax positions (overlapping windows) carry identical values,
    # so a select-chain is exactly PyTorch's scatter; untouched positions stay 0.
    def unpool_one(v, bk):
        Lp, C = v.shape
        Lout = Lp + K - 1                            # PyTorch default output size
        pad = K - 1
        zv = jnp.zeros((pad, C), jnp.float32)
        zk = jnp.full((pad, C), -1, jnp.int32)       # -1 never matches a shift
        v_pad = jnp.concatenate([zv, v, zv], axis=0)
        k_pad = jnp.concatenate([zk, bk, zk], axis=0)
        y = jnp.zeros((Lout, C), jnp.float32)
        for s in range(K):                           # static, unrolled (4 passes)
            start = pad - s
            vs = v_pad[start:start + Lout, :]
            ks = k_pad[start:start + Lout, :]
            y = jnp.where(ks == s, vs, y)
        return y

    # ---------------- encoder ----------------
    xs = [x_ref[b] for b in range(N)]                # list of (L, Cin)
    xs = conv_all(xs, w1_ref, b1_ref)
    xs = conv_all(xs, w2_ref, b2_ref)
    xs = conv_all(xs, w3_ref, b3_ref)

    # ---------------- BatchNorm1d, training mode (batch stats, biased var, eps=1e-5)
    L_bn, _ = xs[0].shape
    count = float(N * L_bn)
    mean = sum(jnp.sum(xb, axis=0, keepdims=True) for xb in xs) / count      # (1, C)
    var = sum(jnp.sum((xb - mean) ** 2, axis=0, keepdims=True) for xb in xs) / count
    scale = jax.lax.rsqrt(var + 1e-5) * g_ref[...]
    shift = beta_ref[...] - mean * scale
    xs = [xb * scale + shift for xb in xs]

    # ---------------- pool / unpool ----------------
    xs = [unpool_one(*pool_one(xb)) for xb in xs]

    # ---------------- decoder ----------------
    xs = deconv_all(xs, d1w_ref, d1b_ref)
    xs = deconv_all(xs, d2w_ref, d2b_ref)
    xs = deconv_all(xs, d3w_ref, d3b_ref)

    for b in range(N):
        o_ref[b] = xs[b]


# ---------------------------------------------------------------------------
# One-time weight preprocessing (hoisted out of the forward path).
# ---------------------------------------------------------------------------
def prepare_params(p):
    """PyTorch-layout params -> kernel-ready im2col layouts (done once)."""
    K = KERNEL_SIZE

    def conv_w(w_pt):       # Conv1d weight (Cout, Cin, K) -> (K*Cin, Cout)
        Cout, Cin, _ = w_pt.shape
        return jnp.transpose(w_pt, (2, 1, 0)).reshape(K * Cin, Cout)

    def deconv_w(w_pt):     # ConvTranspose1d weight (Cin, Cout, K) -> flipped (K*Cin, Cout)
        Cin, Cout, _ = w_pt.shape
        return jnp.transpose(jnp.flip(w_pt, axis=2), (2, 0, 1)).reshape(K * Cin, Cout)

    row = lambda v: v.reshape(1, -1)
    return (
        conv_w(p["w1"]), row(p["b1"]),
        conv_w(p["w2"]), row(p["b2"]),
        conv_w(p["w3"]), row(p["b3"]),
        row(p["bn_g"]), row(p["bn_b"]),
        deconv_w(p["d1_w"]), row(p["d1_b"]),
        deconv_w(p["d2_w"]), row(p["d2_b"]),
        deconv_w(p["d3_w"]), row(p["d3_b"]),
    )


# ---------------------------------------------------------------------------
# Forward wrapper: single pallas_call, everything resident in VMEM.
# ---------------------------------------------------------------------------
def audio_encoder_forward(prepped, x_ncl):
    # x_ncl: (N, C_in, L) in PyTorch NCL layout.
    N, Cin, L = x_ncl.shape
    x = jnp.transpose(x_ncl, (0, 2, 1))              # -> (N, L, Cin) channels-last
    out_nlc = pl.pallas_call(
        _fused_audio_encoder_kernel,
        out_shape=jax.ShapeDtypeStruct((N, L, Cin), jnp.float32),
        in_specs=[_VMEM_SPEC] * (1 + len(prepped)),
        out_specs=_VMEM_SPEC,
    )(x, *prepped)
    return jnp.transpose(out_nlc, (0, 2, 1))         # back to (N, C_in, L)


# ---------------------------------------------------------------------------
# Deterministic init with PyTorch-default shapes/scales (U(-1/sqrt(fan), 1/sqrt(fan)))
# ---------------------------------------------------------------------------
def init_params(key):
    K = KERNEL_SIZE
    ks = jax.random.split(key, 12)

    def u(k, shape, fan_in):
        b = float(fan_in) ** -0.5
        return jax.random.uniform(k, shape, jnp.float32, -b, b)

    p = {}
    # encoder Conv1d weights in PyTorch layout (Cout, Cin, K)
    p["w1"] = u(ks[0], (32, 20, K), 20 * K);   p["b1"] = u(ks[1], (32,), 20 * K)
    p["w2"] = u(ks[2], (64, 32, K), 32 * K);   p["b2"] = u(ks[3], (64,), 32 * K)
    p["w3"] = u(ks[4], (128, 64, K), 64 * K);  p["b3"] = u(ks[5], (128,), 64 * K)
    # BatchNorm1d(128) defaults: weight=1, bias=0
    p["bn_g"] = jnp.ones((128,), jnp.float32)
    p["bn_b"] = jnp.zeros((128,), jnp.float32)
    # decoder ConvTranspose1d weights in PyTorch layout (Cin, Cout, K)
    p["d1_w"] = u(ks[6], (128, 64, K), 64 * K);  p["d1_b"] = u(ks[7], (64,), 64 * K)
    p["d2_w"] = u(ks[8], (64, 32, K), 32 * K);   p["d2_b"] = u(ks[9], (32,), 32 * K)
    p["d3_w"] = u(ks[10], (32, 20, K), 20 * K);  p["d3_b"] = u(ks[11], (20,), 20 * K)
    return p


if __name__ == "__main__":
    key = jax.random.PRNGKey(0)
    k_x, k_p = jax.random.split(key)
    # (N=2, C_in=20, L=24) -- L must be >= 13 so all stages keep a positive length
    x = jax.random.normal(k_x, (2, 20, 24), jnp.float32)
    params = init_params(k_p)
    prepped = prepare_params(params)   # one-time weight prep, outside the forward path

    fwd = jax.jit(audio_encoder_forward)
    out = jax.block_until_ready(fwd(prepped, x))

    assert out.shape == (2, 20, 24), out.shape
    assert out.dtype == jnp.float32
    assert bool(jnp.all(jnp.isfinite(out)))
    print("KERNEL_OK")
</pallas_src>

<mosaic_0001>
module attributes {stable_mosaic.version = 11 : i64} {
  func.func @_fused_audio_encoder_kernel(%arg0: memref<2x24x20xf32, #tpu.memory_space<vmem>>, %arg1: memref<80x32xf32, #tpu.memory_space<vmem>>, %arg2: memref<1x32xf32, #tpu.memory_space<vmem>>, %arg3: memref<128x64xf32, #tpu.memory_space<vmem>>, %arg4: memref<1x64xf32, #tpu.memory_space<vmem>>, %arg5: memref<256x128xf32, #tpu.memory_space<vmem>>, %arg6: memref<1x128xf32, #tpu.memory_space<vmem>>, %arg7: memref<1x128xf32, #tpu.memory_space<vmem>>, %arg8: memref<1x128xf32, #tpu.memory_space<vmem>>, %arg9: memref<512x64xf32, #tpu.memory_space<vmem>>, %arg10: memref<1x64xf32, #tpu.memory_space<vmem>>, %arg11: memref<256x32xf32, #tpu.memory_space<vmem>>, %arg12: memref<1x32xf32, #tpu.memory_space<vmem>>, %arg13: memref<128x20xf32, #tpu.memory_space<vmem>>, %arg14: memref<1x20xf32, #tpu.memory_space<vmem>>, %arg15: memref<2x24x20xf32, #tpu.memory_space<vmem>>) attributes {dimension_semantics = [], scalar_prefetch = 0 : i64, scratch_operands = 0 : i64, tpu.core_type = #tpu.core_type<tc>} {
    %c0 = arith.constant 0 : index
    %c0_0 = arith.constant 0 : index
    %c0_1 = arith.constant 0 : index
    %0 = vector.load %arg0[%c0, %c0_0, %c0_1] : memref<2x24x20xf32, #tpu.memory_space<vmem>>, vector<1x24x20xf32>
    %1 = vector.shape_cast %0 : vector<1x24x20xf32> to vector<24x20xf32>
    %c1 = arith.constant 1 : index
    %c0_2 = arith.constant 0 : index
    %c0_3 = arith.constant 0 : index
    %2 = vector.load %arg0[%c1, %c0_2, %c0_3] : memref<2x24x20xf32, #tpu.memory_space<vmem>>, vector<1x24x20xf32>
    %3 = vector.shape_cast %2 : vector<1x24x20xf32> to vector<24x20xf32>
    %4 = vector.extract_strided_slice %1 {offsets = [0, 0], sizes = [21, 20], strides = [1, 1]} : vector<24x20xf32> to vector<21x20xf32>
    %5 = vector.extract_strided_slice %1 {offsets = [1, 0], sizes = [21, 20], strides = [1, 1]} : vector<24x20xf32> to vector<21x20xf32>
    %6 = vector.extract_strided_slice %1 {offsets = [2, 0], sizes = [21, 20], strides = [1, 1]} : vector<24x20xf32> to vector<21x20xf32>
    %7 = vector.extract_strided_slice %1 {offsets = [3, 0], sizes = [21, 20], strides = [1, 1]} : vector<24x20xf32> to vector<21x20xf32>
    %8 = tpu.concatenate %4, %5, %6, %7 in 1 : vector<21x20xf32>, vector<21x20xf32>, vector<21x20xf32>, vector<21x20xf32> -> vector<21x80xf32>
    %9 = vector.extract_strided_slice %3 {offsets = [0, 0], sizes = [21, 20], strides = [1, 1]} : vector<24x20xf32> to vector<21x20xf32>
    %10 = vector.extract_strided_slice %3 {offsets = [1, 0], sizes = [21, 20], strides = [1, 1]} : vector<24x20xf32> to vector<21x20xf32>
    %11 = vector.extract_strided_slice %3 {offsets = [2, 0], sizes = [21, 20], strides = [1, 1]} : vector<24x20xf32> to vector<21x20xf32>
    %12 = vector.extract_strided_slice %3 {offsets = [3, 0], sizes = [21, 20], strides = [1, 1]} : vector<24x20xf32> to vector<21x20xf32>
    %13 = tpu.concatenate %9, %10, %11, %12 in 1 : vector<21x20xf32>, vector<21x20xf32>, vector<21x20xf32>, vector<21x20xf32> -> vector<21x80xf32>
    %14 = tpu.concatenate %8, %13 in 0 : vector<21x80xf32>, vector<21x80xf32> -> vector<42x80xf32>
    %c0_4 = arith.constant 0 : index
    %c0_5 = arith.constant 0 : index
    %15 = vector.load %arg1[%c0_4, %c0_5] : memref<80x32xf32, #tpu.memory_space<vmem>>, vector<80x32xf32>
    %cst = arith.constant dense<0.000000e+00> : vector<42x32xf32>
    %16 = tpu.matmul %14, %15, %cst {dimension_numbers = #tpu.dot_dimension_numbers<[1], [0], [0], [1], [0, 0, 1, 1], [], []>} : vector<42x80xf32>, vector<80x32xf32>, vector<42x32xf32> -> vector<42x32xf32>
    %c0_6 = arith.constant 0 : index
    %c0_7 = arith.constant 0 : index
    %17 = vector.load %arg2[%c0_6, %c0_7] : memref<1x32xf32, #tpu.memory_space<vmem>>, vector<1x32xf32>
    %18 = vector.broadcast %17 : vector<1x32xf32> to vector<42x32xf32>
    %19 = arith.addf %16, %18 : vector<42x32xf32>
    %20 = vector.extract_strided_slice %19 {offsets = [0, 0], sizes = [21, 32], strides = [1, 1]} : vector<42x32xf32> to vector<21x32xf32>
    %21 = vector.extract_strided_slice %19 {offsets = [21, 0], sizes = [21, 32], strides = [1, 1]} : vector<42x32xf32> to vector<21x32xf32>
    %22 = vector.extract_strided_slice %20 {offsets = [0, 0], sizes = [18, 32], strides = [1, 1]} : vector<21x32xf32> to vector<18x32xf32>
    %23 = vector.extract_strided_slice %20 {offsets = [1, 0], sizes = [18, 32], strides = [1, 1]} : vector<21x32xf32> to vector<18x32xf32>
    %24 = vector.extract_strided_slice %20 {offsets = [2, 0], sizes = [18, 32], strides = [1, 1]} : vector<21x32xf32> to vector<18x32xf32>
    %25 = vector.extract_strided_slice %20 {offsets = [3, 0], sizes = [18, 32], strides = [1, 1]} : vector<21x32xf32> to vector<18x32xf32>
    %26 = tpu.concatenate %22, %23, %24, %25 in 1 : vector<18x32xf32>, vector<18x32xf32>, vector<18x32xf32>, vector<18x32xf32> -> vector<18x128xf32>
    %27 = vector.extract_strided_slice %21 {offsets = [0, 0], sizes = [18, 32], strides = [1, 1]} : vector<21x32xf32> to vector<18x32xf32>
    %28 = vector.extract_strided_slice %21 {offsets = [1, 0], sizes = [18, 32], strides = [1, 1]} : vector<21x32xf32> to vector<18x32xf32>
    %29 = vector.extract_strided_slice %21 {offsets = [2, 0], sizes = [18, 32], strides = [1, 1]} : vector<21x32xf32> to vector<18x32xf32>
    %30 = vector.extract_strided_slice %21 {offsets = [3, 0], sizes = [18, 32], strides = [1, 1]} : vector<21x32xf32> to vector<18x32xf32>
    %31 = tpu.concatenate %27, %28, %29, %30 in 1 : vector<18x32xf32>, vector<18x32xf32>, vector<18x32xf32>, vector<18x32xf32> -> vector<18x128xf32>
    %32 = tpu.concatenate %26, %31 in 0 : vector<18x128xf32>, vector<18x128xf32> -> vector<36x128xf32>
    %c0_8 = arith.constant 0 : index
    %c0_9 = arith.constant 0 : index
    %33 = vector.load %arg3[%c0_8, %c0_9] : memref<128x64xf32, #tpu.memory_space<vmem>>, vector<128x64xf32>
    %cst_10 = arith.constant dense<0.000000e+00> : vector<36x64xf32>
    %34 = tpu.matmul %32, %33, %cst_10 {dimension_numbers = #tpu.dot_dimension_numbers<[1], [0], [0], [1], [0, 0, 1, 1], [], []>} : vector<36x128xf32>, vector<128x64xf32>, vector<36x64xf32> -> vector<36x64xf32>
    %c0_11 = arith.constant 0 : index
    %c0_12 = arith.constant 0 : index
    %35 = vector.load %arg4[%c0_11, %c0_12] : memref<1x64xf32, #tpu.memory_space<vmem>>, vector<1x64xf32>
    %36 = vector.broadcast %35 : vector<1x64xf32> to vector<36x64xf32>
    %37 = arith.addf %34, %36 : vector<36x64xf32>
    %38 = vector.extract_strided_slice %37 {offsets = [0, 0], sizes = [18, 64], strides = [1, 1]} : vector<36x64xf32> to vector<18x64xf32>
    %39 = vector.extract_strided_slice %37 {offsets = [18, 0], sizes = [18, 64], strides = [1, 1]} : vector<36x64xf32> to vector<18x64xf32>
    %40 = vector.extract_strided_slice %38 {offsets = [0, 0], sizes = [15, 64], strides = [1, 1]} : vector<18x64xf32> to vector<15x64xf32>
    %41 = vector.extract_strided_slice %38 {offsets = [1, 0], sizes = [15, 64], strides = [1, 1]} : vector<18x64xf32> to vector<15x64xf32>
    %42 = vector.extract_strided_slice %38 {offsets = [2, 0], sizes = [15, 64], strides = [1, 1]} : vector<18x64xf32> to vector<15x64xf32>
    %43 = vector.extract_strided_slice %38 {offsets = [3, 0], sizes = [15, 64], strides = [1, 1]} : vector<18x64xf32> to vector<15x64xf32>
    %44 = tpu.concatenate %40, %41, %42, %43 in 1 : vector<15x64xf32>, vector<15x64xf32>, vector<15x64xf32>, vector<15x64xf32> -> vector<15x256xf32>
    %45 = vector.extract_strided_slice %39 {offsets = [0, 0], sizes = [15, 64], strides = [1, 1]} : vector<18x64xf32> to vector<15x64xf32>
    %46 = vector.extract_strided_slice %39 {offsets = [1, 0], sizes = [15, 64], strides = [1, 1]} : vector<18x64xf32> to vector<15x64xf32>
    %47 = vector.extract_strided_slice %39 {offsets = [2, 0], sizes = [15, 64], strides = [1, 1]} : vector<18x64xf32> to vector<15x64xf32>
    %48 = vector.extract_strided_slice %39 {offsets = [3, 0], sizes = [15, 64], strides = [1, 1]} : vector<18x64xf32> to vector<15x64xf32>
    %49 = tpu.concatenate %45, %46, %47, %48 in 1 : vector<15x64xf32>, vector<15x64xf32>, vector<15x64xf32>, vector<15x64xf32> -> vector<15x256xf32>
    %50 = tpu.concatenate %44, %49 in 0 : vector<15x256xf32>, vector<15x256xf32> -> vector<30x256xf32>
    %c0_13 = arith.constant 0 : index
    %c0_14 = arith.constant 0 : index
    %51 = vector.load %arg5[%c0_13, %c0_14] : memref<256x128xf32, #tpu.memory_space<vmem>>, vector<256x128xf32>
    %cst_15 = arith.constant dense<0.000000e+00> : vector<30x128xf32>
    %52 = tpu.matmul %50, %51, %cst_15 {dimension_numbers = #tpu.dot_dimension_numbers<[1], [0], [0], [1], [0, 0, 1, 1], [], []>} : vector<30x256xf32>, vector<256x128xf32>, vector<30x128xf32> -> vector<30x128xf32>
    %c0_16 = arith.constant 0 : index
    %c0_17 = arith.constant 0 : index
    %53 = vector.load %arg6[%c0_16, %c0_17] : memref<1x128xf32, #tpu.memory_space<vmem>>, vector<1x128xf32>
    %54 = vector.broadcast %53 : vector<1x128xf32> to vector<30x128xf32>
    %55 = arith.addf %52, %54 : vector<30x128xf32>
    %56 = vector.extract_strided_slice %55 {offsets = [0, 0], sizes = [15, 128], strides = [1, 1]} : vector<30x128xf32> to vector<15x128xf32>
    %57 = vector.extract_strided_slice %55 {offsets = [15, 0], sizes = [15, 128], strides = [1, 1]} : vector<30x128xf32> to vector<15x128xf32>
    %cst_18 = arith.constant dense<0.000000e+00> : vector<128xf32>
    %58 = vector.multi_reduction <add>, %56, %cst_18 [0] : vector<15x128xf32> to vector<128xf32>
    %59 = vector.shape_cast %58 : vector<128xf32> to vector<1x128xf32>
    %cst_19 = arith.constant 0.000000e+00 : f32
    %60 = vector.broadcast %cst_19 : f32 to vector<1x128xf32>
    %61 = arith.addf %60, %59 : vector<1x128xf32>
    %cst_20 = arith.constant dense<0.000000e+00> : vector<128xf32>
    %62 = vector.multi_reduction <add>, %57, %cst_20 [0] : vector<15x128xf32> to vector<128xf32>
    %63 = vector.shape_cast %62 : vector<128xf32> to vector<1x128xf32>
    %64 = arith.addf %61, %63 : vector<1x128xf32>
    %cst_21 = arith.constant 3.000000e+01 : f32
    %65 = vector.broadcast %cst_21 : f32 to vector<1x128xf32>
    %66 = arith.divf %64, %65 : vector<1x128xf32>
    %67 = vector.broadcast %66 : vector<1x128xf32> to vector<15x128xf32>
    %68 = arith.subf %56, %67 : vector<15x128xf32>
    %69 = arith.mulf %68, %68 : vector<15x128xf32>
    %cst_22 = arith.constant dense<0.000000e+00> : vector<128xf32>
    %70 = vector.multi_reduction <add>, %69, %cst_22 [0] : vector<15x128xf32> to vector<128xf32>
    %71 = vector.shape_cast %70 : vector<128xf32> to vector<1x128xf32>
    %cst_23 = arith.constant 0.000000e+00 : f32
    %72 = vector.broadcast %cst_23 : f32 to vector<1x128xf32>
    %73 = arith.addf %72, %71 : vector<1x128xf32>
    %74 = vector.broadcast %66 : vector<1x128xf32> to vector<15x128xf32>
    %75 = arith.subf %57, %74 : vector<15x128xf32>
    %76 = arith.mulf %75, %75 : vector<15x128xf32>
    %cst_24 = arith.constant dense<0.000000e+00> : vector<128xf32>
    %77 = vector.multi_reduction <add>, %76, %cst_24 [0] : vector<15x128xf32> to vector<128xf32>
    %78 = vector.shape_cast %77 : vector<128xf32> to vector<1x128xf32>
    %79 = arith.addf %73, %78 : vector<1x128xf32>
    %cst_25 = arith.constant 3.000000e+01 : f32
    %80 = vector.broadcast %cst_25 : f32 to vector<1x128xf32>
    %81 = arith.divf %79, %80 : vector<1x128xf32>
    %cst_26 = arith.constant 9.99999974E-6 : f32
    %82 = vector.broadcast %cst_26 : f32 to vector<1x128xf32>
    %83 = arith.addf %81, %82 : vector<1x128xf32>
    %84 = math.rsqrt %83 : vector<1x128xf32>
    %c0_27 = arith.constant 0 : index
    %c0_28 = arith.constant 0 : index
    %85 = vector.load %arg7[%c0_27, %c0_28] : memref<1x128xf32, #tpu.memory_space<vmem>>, vector<1x128xf32>
    %86 = arith.mulf %84, %85 : vector<1x128xf32>
    %c0_29 = arith.constant 0 : index
    %c0_30 = arith.constant 0 : index
    %87 = vector.load %arg8[%c0_29, %c0_30] : memref<1x128xf32, #tpu.memory_space<vmem>>, vector<1x128xf32>
    %88 = arith.mulf %66, %86 : vector<1x128xf32>
    %89 = arith.subf %87, %88 : vector<1x128xf32>
    %90 = vector.broadcast %86 : vector<1x128xf32> to vector<15x128xf32>
    %91 = arith.mulf %56, %90 : vector<15x128xf32>
    %92 = vector.broadcast %89 : vector<1x128xf32> to vector<15x128xf32>
    %93 = arith.addf %91, %92 : vector<15x128xf32>
    %94 = vector.broadcast %86 : vector<1x128xf32> to vector<15x128xf32>
    %95 = arith.mulf %57, %94 : vector<15x128xf32>
    %96 = vector.broadcast %89 : vector<1x128xf32> to vector<15x128xf32>
    %97 = arith.addf %95, %96 : vector<15x128xf32>
    %98 = vector.extract_strided_slice %93 {offsets = [0, 0], sizes = [12, 128], strides = [1, 1]} : vector<15x128xf32> to vector<12x128xf32>
    %c0_i32 = arith.constant 0 : i32
    %99 = vector.broadcast %c0_i32 : i32 to vector<12x128xi32>
    %100 = vector.extract_strided_slice %93 {offsets = [1, 0], sizes = [12, 128], strides = [1, 1]} : vector<15x128xf32> to vector<12x128xf32>
    %101 = arith.cmpf ogt, %100, %98 : vector<12x128xf32>
    %c1_i32 = arith.constant 1 : i32
    %102 = vector.broadcast %c1_i32 : i32 to vector<12x128xi32>
    %103 = arith.select %101, %102, %99 : vector<12x128xi1>, vector<12x128xi32>
    %104 = arith.select %101, %100, %98 : vector<12x128xi1>, vector<12x128xf32>
    %105 = vector.extract_strided_slice %93 {offsets = [2, 0], sizes = [12, 128], strides = [1, 1]} : vector<15x128xf32> to vector<12x128xf32>
    %106 = arith.cmpf ogt, %105, %104 : vector<12x128xf32>
    %c2_i32 = arith.constant 2 : i32
    %107 = vector.broadcast %c2_i32 : i32 to vector<12x128xi32>
    %108 = arith.select %106, %107, %103 : vector<12x128xi1>, vector<12x128xi32>
    %109 = arith.select %106, %105, %104 : vector<12x128xi1>, vector<12x128xf32>
    %110 = vector.extract_strided_slice %93 {offsets = [3, 0], sizes = [12, 128], strides = [1, 1]} : vector<15x128xf32> to vector<12x128xf32>
    %111 = arith.cmpf ogt, %110, %109 : vector<12x128xf32>
    %c3_i32 = arith.constant 3 : i32
    %112 = vector.broadcast %c3_i32 : i32 to vector<12x128xi32>
    %113 = arith.select %111, %112, %108 : vector<12x128xi1>, vector<12x128xi32>
    %114 = arith.select %111, %110, %109 : vector<12x128xi1>, vector<12x128xf32>
    %cst_31 = arith.constant 0.000000e+00 : f32
    %115 = vector.broadcast %cst_31 : f32 to vector<3x128xf32>
    %c-1_i32 = arith.constant -1 : i32
    %116 = vector.broadcast %c-1_i32 : i32 to vector<3x128xi32>
    %117 = tpu.concatenate %115, %114, %115 in 0 : vector<3x128xf32>, vector<12x128xf32>, vector<3x128xf32> -> vector<18x128xf32>
    %118 = tpu.concatenate %116, %113, %116 in 0 : vector<3x128xi32>, vector<12x128xi32>, vector<3x128xi32> -> vector<18x128xi32>
    %cst_32 = arith.constant 0.000000e+00 : f32
    %119 = vector.broadcast %cst_32 : f32 to vector<15x128xf32>
    %120 = vector.extract_strided_slice %117 {offsets = [3, 0], sizes = [15, 128], strides = [1, 1]} : vector<18x128xf32> to vector<15x128xf32>
    %121 = vector.extract_strided_slice %118 {offsets = [3, 0], sizes = [15, 128], strides = [1, 1]} : vector<18x128xi32> to vector<15x128xi32>
    %c0_i32_33 = arith.constant 0 : i32
    %122 = vector.broadcast %c0_i32_33 : i32 to vector<15x128xi32>
    %123 = arith.cmpi eq, %121, %122 : vector<15x128xi32>
    %124 = arith.select %123, %120, %119 : vector<15x128xi1>, vector<15x128xf32>
    %125 = vector.extract_strided_slice %117 {offsets = [2, 0], sizes = [15, 128], strides = [1, 1]} : vector<18x128xf32> to vector<15x128xf32>
    %126 = vector.extract_strided_slice %118 {offsets = [2, 0], sizes = [15, 128], strides = [1, 1]} : vector<18x128xi32> to vector<15x128xi32>
    %c1_i32_34 = arith.constant 1 : i32
    %127 = vector.broadcast %c1_i32_34 : i32 to vector<15x128xi32>
    %128 = arith.cmpi eq, %126, %127 : vector<15x128xi32>
    %129 = arith.select %128, %125, %124 : vector<15x128xi1>, vector<15x128xf32>
    %130 = vector.extract_strided_slice %117 {offsets = [1, 0], sizes = [15, 128], strides = [1, 1]} : vector<18x128xf32> to vector<15x128xf32>
    %131 = vector.extract_strided_slice %118 {offsets = [1, 0], sizes = [15, 128], strides = [1, 1]} : vector<18x128xi32> to vector<15x128xi32>
    %c2_i32_35 = arith.constant 2 : i32
    %132 = vector.broadcast %c2_i32_35 : i32 to vector<15x128xi32>
    %133 = arith.cmpi eq, %131, %132 : vector<15x128xi32>
    %134 = arith.select %133, %130, %129 : vector<15x128xi1>, vector<15x128xf32>
    %135 = vector.extract_strided_slice %117 {offsets = [0, 0], sizes = [15, 128], strides = [1, 1]} : vector<18x128xf32> to vector<15x128xf32>
    %136 = vector.extract_strided_slice %118 {offsets = [0, 0], sizes = [15, 128], strides = [1, 1]} : vector<18x128xi32> to vector<15x128xi32>
    %c3_i32_36 = arith.constant 3 : i32
    %137 = vector.broadcast %c3_i32_36 : i32 to vector<15x128xi32>
    %138 = arith.cmpi eq, %136, %137 : vector<15x128xi32>
    %139 = arith.select %138, %135, %134 : vector<15x128xi1>, vector<15x128xf32>
    %140 = vector.extract_strided_slice %97 {offsets = [0, 0], sizes = [12, 128], strides = [1, 1]} : vector<15x128xf32> to vector<12x128xf32>
    %c0_i32_37 = arith.constant 0 : i32
    %141 = vector.broadcast %c0_i32_37 : i32 to vector<12x128xi32>
    %142 = vector.extract_strided_slice %97 {offsets = [1, 0], sizes = [12, 128], strides = [1, 1]} : vector<15x128xf32> to vector<12x128xf32>
    %143 = arith.cmpf ogt, %142, %140 : vector<12x128xf32>
    %c1_i32_38 = arith.constant 1 : i32
    %144 = vector.broadcast %c1_i32_38 : i32 to vector<12x128xi32>
    %145 = arith.select %143, %144, %141 : vector<12x128xi1>, vector<12x128xi32>
    %146 = arith.select %143, %142, %140 : vector<12x128xi1>, vector<12x128xf32>
    %147 = vector.extract_strided_slice %97 {offsets = [2, 0], sizes = [12, 128], strides = [1, 1]} : vector<15x128xf32> to vector<12x128xf32>
    %148 = arith.cmpf ogt, %147, %146 : vector<12x128xf32>
    %c2_i32_39 = arith.constant 2 : i32
    %149 = vector.broadcast %c2_i32_39 : i32 to vector<12x128xi32>
    %150 = arith.select %148, %149, %145 : vector<12x128xi1>, vector<12x128xi32>
    %151 = arith.select %148, %147, %146 : vector<12x128xi1>, vector<12x128xf32>
    %152 = vector.extract_strided_slice %97 {offsets = [3, 0], sizes = [12, 128], strides = [1, 1]} : vector<15x128xf32> to vector<12x128xf32>
    %153 = arith.cmpf ogt, %152, %151 : vector<12x128xf32>
    %c3_i32_40 = arith.constant 3 : i32
    %154 = vector.broadcast %c3_i32_40 : i32 to vector<12x128xi32>
    %155 = arith.select %153, %154, %150 : vector<12x128xi1>, vector<12x128xi32>
    %156 = arith.select %153, %152, %151 : vector<12x128xi1>, vector<12x128xf32>
    %cst_41 = arith.constant 0.000000e+00 : f32
    %157 = vector.broadcast %cst_41 : f32 to vector<3x128xf32>
    %c-1_i32_42 = arith.constant -1 : i32
    %158 = vector.broadcast %c-1_i32_42 : i32 to vector<3x128xi32>
    %159 = tpu.concatenate %157, %156, %157 in 0 : vector<3x128xf32>, vector<12x128xf32>, vector<3x128xf32> -> vector<18x128xf32>
    %160 = tpu.concatenate %158, %155, %158 in 0 : vector<3x128xi32>, vector<12x128xi32>, vector<3x128xi32> -> vector<18x128xi32>
    %cst_43 = arith.constant 0.000000e+00 : f32
    %161 = vector.broadcast %cst_43 : f32 to vector<15x128xf32>
    %162 = vector.extract_strided_slice %159 {offsets = [3, 0], sizes = [15, 128], strides = [1, 1]} : vector<18x128xf32> to vector<15x128xf32>
    %163 = vector.extract_strided_slice %160 {offsets = [3, 0], sizes = [15, 128], strides = [1, 1]} : vector<18x128xi32> to vector<15x128xi32>
    %c0_i32_44 = arith.constant 0 : i32
    %164 = vector.broadcast %c0_i32_44 : i32 to vector<15x128xi32>
    %165 = arith.cmpi eq, %163, %164 : vector<15x128xi32>
    %166 = arith.select %165, %162, %161 : vector<15x128xi1>, vector<15x128xf32>
    %167 = vector.extract_strided_slice %159 {offsets = [2, 0], sizes = [15, 128], strides = [1, 1]} : vector<18x128xf32> to vector<15x128xf32>
    %168 = vector.extract_strided_slice %160 {offsets = [2, 0], sizes = [15, 128], strides = [1, 1]} : vector<18x128xi32> to vector<15x128xi32>
    %c1_i32_45 = arith.constant 1 : i32
    %169 = vector.broadcast %c1_i32_45 : i32 to vector<15x128xi32>
    %170 = arith.cmpi eq, %168, %169 : vector<15x128xi32>
    %171 = arith.select %170, %167, %166 : vector<15x128xi1>, vector<15x128xf32>
    %172 = vector.extract_strided_slice %159 {offsets = [1, 0], sizes = [15, 128], strides = [1, 1]} : vector<18x128xf32> to vector<15x128xf32>
    %173 = vector.extract_strided_slice %160 {offsets = [1, 0], sizes = [15, 128], strides = [1, 1]} : vector<18x128xi32> to vector<15x128xi32>
    %c2_i32_46 = arith.constant 2 : i32
    %174 = vector.broadcast %c2_i32_46 : i32 to vector<15x128xi32>
    %175 = arith.cmpi eq, %173, %174 : vector<15x128xi32>
    %176 = arith.select %175, %172, %171 : vector<15x128xi1>, vector<15x128xf32>
    %177 = vector.extract_strided_slice %159 {offsets = [0, 0], sizes = [15, 128], strides = [1, 1]} : vector<18x128xf32> to vector<15x128xf32>
    %178 = vector.extract_strided_slice %160 {offsets = [0, 0], sizes = [15, 128], strides = [1, 1]} : vector<18x128xi32> to vector<15x128xi32>
    %c3_i32_47 = arith.constant 3 : i32
    %179 = vector.broadcast %c3_i32_47 : i32 to vector<15x128xi32>
    %180 = arith.cmpi eq, %178, %179 : vector<15x128xi32>
    %181 = arith.select %180, %177, %176 : vector<15x128xi1>, vector<15x128xf32>
    %cst_48 = arith.constant 0.000000e+00 : f32
    %182 = vector.broadcast %cst_48 : f32 to vector<3x128xf32>
    %183 = tpu.concatenate %182, %139, %182 in 0 : vector<3x128xf32>, vector<15x128xf32>, vector<3x128xf32> -> vector<21x128xf32>
    %184 = tpu.concatenate %182, %181, %182 in 0 : vector<3x128xf32>, vector<15x128xf32>, vector<3x128xf32> -> vector<21x128xf32>
    %185 = vector.extract_strided_slice %183 {offsets = [0, 0], sizes = [18, 128], strides = [1, 1]} : vector<21x128xf32> to vector<18x128xf32>
    %186 = vector.extract_strided_slice %183 {offsets = [1, 0], sizes = [18, 128], strides = [1, 1]} : vector<21x128xf32> to vector<18x128xf32>
    %187 = vector.extract_strided_slice %183 {offsets = [2, 0], sizes = [18, 128], strides = [1, 1]} : vector<21x128xf32> to vector<18x128xf32>
    %188 = vector.extract_strided_slice %183 {offsets = [3, 0], sizes = [18, 128], strides = [1, 1]} : vector<21x128xf32> to vector<18x128xf32>
    %189 = tpu.concatenate %185, %186, %187, %188 in 1 : vector<18x128xf32>, vector<18x128xf32>, vector<18x128xf32>, vector<18x128xf32> -> vector<18x512xf32>
    %190 = vector.extract_strided_slice %184 {offsets = [0, 0], sizes = [18, 128], strides = [1, 1]} : vector<21x128xf32> to vector<18x128xf32>
    %191 = vector.extract_strided_slice %184 {offsets = [1, 0], sizes = [18, 128], strides = [1, 1]} : vector<21x128xf32> to vector<18x128xf32>
    %192 = vector.extract_strided_slice %184 {offsets = [2, 0], sizes = [18, 128], strides = [1, 1]} : vector<21x128xf32> to vector<18x128xf32>
    %193 = vector.extract_strided_slice %184 {offsets = [3, 0], sizes = [18, 128], strides = [1, 1]} : vector<21x128xf32> to vector<18x128xf32>
    %194 = tpu.concatenate %190, %191, %192, %193 in 1 : vector<18x128xf32>, vector<18x128xf32>, vector<18x128xf32>, vector<18x128xf32> -> vector<18x512xf32>
    %195 = tpu.concatenate %189, %194 in 0 : vector<18x512xf32>, vector<18x512xf32> -> vector<36x512xf32>
    %c0_49 = arith.constant 0 : index
    %c0_50 = arith.constant 0 : index
    %196 = vector.load %arg9[%c0_49, %c0_50] : memref<512x64xf32, #tpu.memory_space<vmem>>, vector<512x64xf32>
    %cst_51 = arith.constant dense<0.000000e+00> : vector<36x64xf32>
    %197 = tpu.matmul %195, %196, %cst_51 {dimension_numbers = #tpu.dot_dimension_numbers<[1], [0], [0], [1], [0, 0, 1, 1], [], []>} : vector<36x512xf32>, vector<512x64xf32>, vector<36x64xf32> -> vector<36x64xf32>
    %c0_52 = arith.constant 0 : index
    %c0_53 = arith.constant 0 : index
    %198 = vector.load %arg10[%c0_52, %c0_53] : memref<1x64xf32, #tpu.memory_space<vmem>>, vector<1x64xf32>
    %199 = vector.broadcast %198 : vector<1x64xf32> to vector<36x64xf32>
    %200 = arith.addf %197, %199 : vector<36x64xf32>
    %201 = vector.extract_strided_slice %200 {offsets = [0, 0], sizes = [18, 64], strides = [1, 1]} : vector<36x64xf32> to vector<18x64xf32>
    %202 = vector.extract_strided_slice %200 {offsets = [18, 0], sizes = [18, 64], strides = [1, 1]} : vector<36x64xf32> to vector<18x64xf32>
    %cst_54 = arith.constant 0.000000e+00 : f32
    %203 = vector.broadcast %cst_54 : f32 to vector<3x64xf32>
    %204 = tpu.concatenate %203, %201, %203 in 0 : vector<3x64xf32>, vector<18x64xf32>, vector<3x64xf32> -> vector<24x64xf32>
    %205 = tpu.concatenate %203, %202, %203 in 0 : vector<3x64xf32>, vector<18x64xf32>, vector<3x64xf32> -> vector<24x64xf32>
    %206 = vector.extract_strided_slice %204 {offsets = [0, 0], sizes = [21, 64], strides = [1, 1]} : vector<24x64xf32> to vector<21x64xf32>
    %207 = vector.extract_strided_slice %204 {offsets = [1, 0], sizes = [21, 64], strides = [1, 1]} : vector<24x64xf32> to vector<21x64xf32>
    %208 = vector.extract_strided_slice %204 {offsets = [2, 0], sizes = [21, 64], strides = [1, 1]} : vector<24x64xf32> to vector<21x64xf32>
    %209 = vector.extract_strided_slice %204 {offsets = [3, 0], sizes = [21, 64], strides = [1, 1]} : vector<24x64xf32> to vector<21x64xf32>
    %210 = tpu.concatenate %206, %207, %208, %209 in 1 : vector<21x64xf32>, vector<21x64xf32>, vector<21x64xf32>, vector<21x64xf32> -> vector<21x256xf32>
    %211 = vector.extract_strided_slice %205 {offsets = [0, 0], sizes = [21, 64], strides = [1, 1]} : vector<24x64xf32> to vector<21x64xf32>
    %212 = vector.extract_strided_slice %205 {offsets = [1, 0], sizes = [21, 64], strides = [1, 1]} : vector<24x64xf32> to vector<21x64xf32>
    %213 = vector.extract_strided_slice %205 {offsets = [2, 0], sizes = [21, 64], strides = [1, 1]} : vector<24x64xf32> to vector<21x64xf32>
    %214 = vector.extract_strided_slice %205 {offsets = [3, 0], sizes = [21, 64], strides = [1, 1]} : vector<24x64xf32> to vector<21x64xf32>
    %215 = tpu.concatenate %211, %212, %213, %214 in 1 : vector<21x64xf32>, vector<21x64xf32>, vector<21x64xf32>, vector<21x64xf32> -> vector<21x256xf32>
    %216 = tpu.concatenate %210, %215 in 0 : vector<21x256xf32>, vector<21x256xf32> -> vector<42x256xf32>
    %c0_55 = arith.constant 0 : index
    %c0_56 = arith.constant 0 : index
    %217 = vector.load %arg11[%c0_55, %c0_56] : memref<256x32xf32, #tpu.memory_space<vmem>>, vector<256x32xf32>
    %cst_57 = arith.constant dense<0.000000e+00> : vector<42x32xf32>
    %218 = tpu.matmul %216, %217, %cst_57 {dimension_numbers = #tpu.dot_dimension_numbers<[1], [0], [0], [1], [0, 0, 1, 1], [], []>} : vector<42x256xf32>, vector<256x32xf32>, vector<42x32xf32> -> vector<42x32xf32>
    %c0_58 = arith.constant 0 : index
    %c0_59 = arith.constant 0 : index
    %219 = vector.load %arg12[%c0_58, %c0_59] : memref<1x32xf32, #tpu.memory_space<vmem>>, vector<1x32xf32>
    %220 = vector.broadcast %219 : vector<1x32xf32> to vector<42x32xf32>
    %221 = arith.addf %218, %220 : vector<42x32xf32>
    %222 = vector.extract_strided_slice %221 {offsets = [0, 0], sizes = [21, 32], strides = [1, 1]} : vector<42x32xf32> to vector<21x32xf32>
    %223 = vector.extract_strided_slice %221 {offsets = [21, 0], sizes = [21, 32], strides = [1, 1]} : vector<42x32xf32> to vector<21x32xf32>
    %cst_60 = arith.constant 0.000000e+00 : f32
    %224 = vector.broadcast %cst_60 : f32 to vector<3x32xf32>
    %225 = tpu.concatenate %224, %222, %224 in 0 : vector<3x32xf32>, vector<21x32xf32>, vector<3x32xf32> -> vector<27x32xf32>
    %226 = tpu.concatenate %224, %223, %224 in 0 : vector<3x32xf32>, vector<21x32xf32>, vector<3x32xf32> -> vector<27x32xf32>
    %227 = vector.extract_strided_slice %225 {offsets = [0, 0], sizes = [24, 32], strides = [1, 1]} : vector<27x32xf32> to vector<24x32xf32>
    %228 = vector.extract_strided_slice %225 {offsets = [1, 0], sizes = [24, 32], strides = [1, 1]} : vector<27x32xf32> to vector<24x32xf32>
    %229 = vector.extract_strided_slice %225 {offsets = [2, 0], sizes = [24, 32], strides = [1, 1]} : vector<27x32xf32> to vector<24x32xf32>
    %230 = vector.extract_strided_slice %225 {offsets = [3, 0], sizes = [24, 32], strides = [1, 1]} : vector<27x32xf32> to vector<24x32xf32>
    %231 = tpu.concatenate %227, %228, %229, %230 in 1 : vector<24x32xf32>, vector<24x32xf32>, vector<24x32xf32>, vector<24x32xf32> -> vector<24x128xf32>
    %232 = vector.extract_strided_slice %226 {offsets = [0, 0], sizes = [24, 32], strides = [1, 1]} : vector<27x32xf32> to vector<24x32xf32>
    %233 = vector.extract_strided_slice %226 {offsets = [1, 0], sizes = [24, 32], strides = [1, 1]} : vector<27x32xf32> to vector<24x32xf32>
    %234 = vector.extract_strided_slice %226 {offsets = [2, 0], sizes = [24, 32], strides = [1, 1]} : vector<27x32xf32> to vector<24x32xf32>
    %235 = vector.extract_strided_slice %226 {offsets = [3, 0], sizes = [24, 32], strides = [1, 1]} : vector<27x32xf32> to vector<24x32xf32>
    %236 = tpu.concatenate %232, %233, %234, %235 in 1 : vector<24x32xf32>, vector<24x32xf32>, vector<24x32xf32>, vector<24x32xf32> -> vector<24x128xf32>
    %237 = tpu.concatenate %231, %236 in 0 : vector<24x128xf32>, vector<24x128xf32> -> vector<48x128xf32>
    %c0_61 = arith.constant 0 : index
    %c0_62 = arith.constant 0 : index
    %238 = vector.load %arg13[%c0_61, %c0_62] : memref<128x20xf32, #tpu.memory_space<vmem>>, vector<128x20xf32>
    %cst_63 = arith.constant dense<0.000000e+00> : vector<48x20xf32>
    %239 = tpu.matmul %237, %238, %cst_63 {dimension_numbers = #tpu.dot_dimension_numbers<[1], [0], [0], [1], [0, 0, 1, 1], [], []>} : vector<48x128xf32>, vector<128x20xf32>, vector<48x20xf32> -> vector<48x20xf32>
    %c0_64 = arith.constant 0 : index
    %c0_65 = arith.constant 0 : index
    %240 = vector.load %arg14[%c0_64, %c0_65] : memref<1x20xf32, #tpu.memory_space<vmem>>, vector<1x20xf32>
    %241 = vector.broadcast %240 : vector<1x20xf32> to vector<48x20xf32>
    %242 = arith.addf %239, %241 : vector<48x20xf32>
    %243 = vector.extract_strided_slice %242 {offsets = [0, 0], sizes = [24, 20], strides = [1, 1]} : vector<48x20xf32> to vector<24x20xf32>
    %244 = vector.extract_strided_slice %242 {offsets = [24, 0], sizes = [24, 20], strides = [1, 1]} : vector<48x20xf32> to vector<24x20xf32>
    %c0_66 = arith.constant 0 : index
    %c0_67 = arith.constant 0 : index
    %c0_68 = arith.constant 0 : index
    %245 = vector.load %arg15[%c0_66, %c0_67, %c0_68] : memref<2x24x20xf32, #tpu.memory_space<vmem>>, vector<1x24x20xf32>
    %246 = vector.shape_cast %245 : vector<1x24x20xf32> to vector<24x20xf32>
    %247 = vector.shape_cast %243 : vector<24x20xf32> to vector<1x24x20xf32>
    tpu.vector_store %arg15[%c0_66, %c0_67, %c0_68], %247 {strides = array<i32>} : memref<2x24x20xf32, #tpu.memory_space<vmem>>, vector<1x24x20xf32>,
    %c1_69 = arith.constant 1 : index
    %c0_70 = arith.constant 0 : index
    %c0_71 = arith.constant 0 : index
    %248 = vector.load %arg15[%c1_69, %c0_70, %c0_71] : memref<2x24x20xf32, #tpu.memory_space<vmem>>, vector<1x24x20xf32>
    %249 = vector.shape_cast %248 : vector<1x24x20xf32> to vector<24x20xf32>
    %250 = vector.shape_cast %244 : vector<24x20xf32> to vector<1x24x20xf32>
    tpu.vector_store %arg15[%c1_69, %c0_70, %c0_71], %250 {strides = array<i32>} : memref<2x24x20xf32, #tpu.memory_space<vmem>>, vector<1x24x20xf32>,
    return
  }
}

</mosaic_0001>

<llo_original>
// kernel: audio_encoder_forward.1
$region0: #{audio_encoder_forward.1}
  #allocation0 [shape = 'u32[]', space=smem, size = 0x4, offset = 0x4, fixed_abs, tag = 'smem constant byte address 0x4 - core index']
  #allocation1 [shape = 'u32[72,128]{1,0:T(1,128)}', space=vmem, size = 0x9000, scoped, tag = 'internal scratch']
  %s0 = inlined_call_operand.vmem [shape: f32[2,24,20], index: 0, kind: input, shape index: {}]
  %s1 = inlined_call_operand.vmem [shape: f32[80,32], index: 1, kind: input, shape index: {}]
  %s2 = inlined_call_operand.vmem [shape: f32[1,32], index: 2, kind: input, shape index: {}]
  %s3 = inlined_call_operand.vmem [shape: f32[128,64], index: 3, kind: input, shape index: {}]
  %s4 = inlined_call_operand.vmem [shape: f32[1,64], index: 4, kind: input, shape index: {}]
  %s5 = inlined_call_operand.vmem [shape: f32[256,128], index: 5, kind: input, shape index: {}]
  %s6 = inlined_call_operand.vmem [shape: f32[1,128], index: 6, kind: input, shape index: {}]
  %s7 = inlined_call_operand.vmem [shape: f32[1,128], index: 7, kind: input, shape index: {}]
  %s8 = inlined_call_operand.vmem [shape: f32[1,128], index: 8, kind: input, shape index: {}]
  %s9 = inlined_call_operand.vmem [shape: f32[512,64], index: 9, kind: input, shape index: {}]
  %s10 = inlined_call_operand.vmem [shape: f32[1,64], index: 10, kind: input, shape index: {}]
  %s11 = inlined_call_operand.vmem [shape: f32[256,32], index: 11, kind: input, shape index: {}]
  %s12 = inlined_call_operand.vmem [shape: f32[1,32], index: 12, kind: input, shape index: {}]
  %s13 = inlined_call_operand.vmem [shape: f32[128,20], index: 13, kind: input, shape index: {}]
  %s14 = inlined_call_operand.vmem [shape: f32[1,20], index: 14, kind: input, shape index: {}]
  %s15 = inlined_call_operand.vmem [shape: f32[2,24,20], index: 15, kind: output, shape index: {}]
  %s16 = sld [smem:[#allocation0]]
  $region70: #{audio_encoder_forward.1} parent=0
    _
  %s18 = ssub.s32 1, %s16
  %s19 = scalar_select 0, %s18, %s16
  // Predicated region
  $region2: #{audio_encoder_forward.1} parent=0 // pred_check
    _
  $region3: #{audio_encoder_forward.1} parent=0 // pred_check_branch
    %21 = sbr.rel (0) target = $region5
  $region4: #{audio_encoder_forward.1} parent=0 // pred_region
    _
  $region5: #{audio_encoder_forward.1} parent=0 // pred_fallthru
    _
  // Predicated region
  $region6: #{audio_encoder_forward.1} parent=0 // pred_check
    _
  $region7: #{audio_encoder_forward.1} parent=0 // pred_check_branch
    %23 = sbr.rel (0) target = $region9
  $region8: #{audio_encoder_forward.1} parent=0 // pred_region
    _
  $region9: #{audio_encoder_forward.1} parent=0 // pred_fallthru
    _
  // Predicated region
  $region10: #{audio_encoder_forward.1} parent=0 // pred_check
    _
  $region11: #{audio_encoder_forward.1} parent=0 // pred_check_branch
    %25 = sbr.rel (0) target = $region13
  $region12: #{audio_encoder_forward.1} parent=0 // pred_region
    _
  $region13: #{audio_encoder_forward.1} parent=0 // pred_fallthru
    _
  // Predicated region
  $region14: #{audio_encoder_forward.1} parent=0 // pred_check
    _
  $region15: #{audio_encoder_forward.1} parent=0 // pred_check_branch
    %27 = sbr.rel (0) target = $region17
  $region16: #{audio_encoder_forward.1} parent=0 // pred_region
    _
  $region17: #{audio_encoder_forward.1} parent=0 // pred_fallthru
    _
  // Predicated region
  $region18: #{audio_encoder_forward.1} parent=0 // pred_check
    _
  $region19: #{audio_encoder_forward.1} parent=0 // pred_check_branch
    %29 = sbr.rel (0) target = $region21
  $region20: #{audio_encoder_forward.1} parent=0 // pred_region
    _
  $region21: #{audio_encoder_forward.1} parent=0 // pred_fallthru
    _
  // Predicated region
  $region22: #{audio_encoder_forward.1} parent=0 // pred_check
    _
  $region23: #{audio_encoder_forward.1} parent=0 // pred_check_branch
    %31 = sbr.rel (0) target = $region25
  $region24: #{audio_encoder_forward.1} parent=0 // pred_region
    _
  $region25: #{audio_encoder_forward.1} parent=0 // pred_fallthru
    _
  // Predicated region
  $region26: #{audio_encoder_forward.1} parent=0 // pred_check
    _
  $region27: #{audio_encoder_forward.1} parent=0 // pred_check_branch
    %33 = sbr.rel (0) target = $region29
  $region28: #{audio_encoder_forward.1} parent=0 // pred_region
    _
  $region29: #{audio_encoder_forward.1} parent=0 // pred_fallthru
    _
  // Predicated region
  $region30: #{audio_encoder_forward.1} parent=0 // pred_check
    _
  $region31: #{audio_encoder_forward.1} parent=0 // pred_check_branch
    %35 = sbr.rel (0) target = $region33
  $region32: #{audio_encoder_forward.1} parent=0 // pred_region
    _
  $region33: #{audio_encoder_forward.1} parent=0 // pred_fallthru
    _
  // Predicated region
  $region34: #{audio_encoder_forward.1} parent=0 // pred_check
    _
  $region35: #{audio_encoder_forward.1} parent=0 // pred_check_branch
    %37 = sbr.rel (0) target = $region37
  $region36: #{audio_encoder_forward.1} parent=0 // pred_region
    _
  $region37: #{audio_encoder_forward.1} parent=0 // pred_fallthru
    _
  // Predicated region
  $region38: #{audio_encoder_forward.1} parent=0 // pred_check
    _
  $region39: #{audio_encoder_forward.1} parent=0 // pred_check_branch
    %39 = sbr.rel (0) target = $region41
  $region40: #{audio_encoder_forward.1} parent=0 // pred_region
    _
  $region41: #{audio_encoder_forward.1} parent=0 // pred_fallthru
    _
  // Predicated region
  $region42: #{audio_encoder_forward.1} parent=0 // pred_check
    _
  $region43: #{audio_encoder_forward.1} parent=0 // pred_check_branch
    %41 = sbr.rel (0) target = $region45
  $region44: #{audio_encoder_forward.1} parent=0 // pred_region
    _
  $region45: #{audio_encoder_forward.1} parent=0 // pred_fallthru
    _
  // Predicated region
  $region46: #{audio_encoder_forward.1} parent=0 // pred_check
    _
  $region47: #{audio_encoder_forward.1} parent=0 // pred_check_branch
    %43 = sbr.rel (0) target = $region49
  $region48: #{audio_encoder_forward.1} parent=0 // pred_region
    _
  $region49: #{audio_encoder_forward.1} parent=0 // pred_fallthru
    _
  // Predicated region
  $region50: #{audio_encoder_forward.1} parent=0 // pred_check
    _
  $region51: #{audio_encoder_forward.1} parent=0 // pred_check_branch
    %45 = sbr.rel (0) target = $region53
  $region52: #{audio_encoder_forward.1} parent=0 // pred_region
    _
  $region53: #{audio_encoder_forward.1} parent=0 // pred_fallthru
    _
  // Predicated region
  $region54: #{audio_encoder_forward.1} parent=0 // pred_check
    _
  $region55: #{audio_encoder_forward.1} parent=0 // pred_check_branch
    %47 = sbr.rel (0) target = $region57
  $region56: #{audio_encoder_forward.1} parent=0 // pred_region
    _
  $region57: #{audio_encoder_forward.1} parent=0 // pred_fallthru
    _
  // Predicated region
  $region58: #{audio_encoder_forward.1} parent=0 // pred_check
    _
  $region59: #{audio_encoder_forward.1} parent=0 // pred_check_branch
    %49 = sbr.rel (0) target = $region61
  $region60: #{audio_encoder_forward.1} parent=0 // pred_region
    _
  $region61: #{audio_encoder_forward.1} parent=0 // pred_fallthru
    _
  %v50 = vld [vmem:[%s0] sm:$0xff]
  %v51 = vld [vmem:[%s0 + $0x8] sm:$0xff]
  %v52 = vld [vmem:[%s0 + $0x10] sm:$0xff]
  %s53 = scalar_lea.vmem %s0, 24
  %v54 = vld [vmem:[%s53] sm:$0xff]
  %v55 = vld [vmem:[%s53 + $0x8] sm:$0xff]
  %v56 = vld [vmem:[%s53 + $0x10] sm:$0xff]
  %vm60 = vcmask 1046528
  %v61 = vrot.slane %v50, 1
  %v62 = vrot.slane %v51, 1
  %v63 = vsel %vm60, %v61, %v62
  %v64 = vrot.slane %v52, 1
  %v65 = vsel %vm60, %v62, %v64
  %66 = vrot.lane.b32.xlu0 %v63, 20
  %v67 = vpop.permute.xlu0 %66
  %68 = vrot.lane.b32.xlu0 %v65, 20
  %v69 = vpop.permute.xlu0 %68
  %70 = vrot.lane.b32.xlu0 %v64, 20
  %v71 = vpop.permute.xlu0 %70
  %vm75 = vcmask 1045504
  %v76 = vrot.slane %v50, 2
  %v77 = vrot.slane %v51, 2
  %v78 = vsel %vm75, %v76, %v77
  %v79 = vrot.slane %v52, 2
  %v80 = vsel %vm75, %v77, %v79
  %81 = vrot.lane.b32.xlu0 %v78, 40
  %v82 = vpop.permute.xlu0 %81
  %83 = vrot.lane.b32.xlu0 %v80, 40
  %v84 = vpop.permute.xlu0 %83
  %85 = vrot.lane.b32.xlu0 %v79, 40
  %v86 = vpop.permute.xlu0 %85
  %vm90 = vcmask 1044480
  %v91 = vrot.slane %v50, 3
  %v92 = vrot.slane %v51, 3
  %v93 = vsel %vm90, %v91, %v92
  %v94 = vrot.slane %v52, 3
  %v95 = vsel %vm90, %v92, %v94
  %96 = vrot.lane.b32.xlu0 %v93, 60
  %v97 = vpop.permute.xlu0 %96
  %98 = vrot.lane.b32.xlu0 %v95, 60
  %v99 = vpop.permute.xlu0 %98
  %100 = vrot.lane.b32.xlu0 %v94, 60
  %v101 = vpop.permute.xlu0 %100
  %vm105 = vcmask 162816
  %v106 = vsel %vm105, %v50, %v67
  %v107 = vsel %vm105, %v51, %v69
  %v108 = vsel %vm105, %v52, %v71
  %vm109 = vcmask 326656
  %v110 = vsel %vm109, %v106, %v82
  %v111 = vsel %vm109, %v107, %v84
  %v112 = vsel %vm109, %v108, %v86
  %vm113 = vcmask 490496
  %v114 = vsel %vm113, %v110, %v97
  %v115 = vsel %vm113, %v111, %v99
  %v116 = vsel %vm113, %v112, %v101
  %v120 = vrot.slane %v54, 1
  %v121 = vrot.slane %v55, 1
  %v122 = vsel %vm60, %v120, %v121
  %v123 = vrot.slane %v56, 1
  %v124 = vsel %vm60, %v121, %v123
  %125 = vrot.lane.b32.xlu0 %v122, 20
  %v126 = vpop.permute.xlu0 %125
  %127 = vrot.lane.b32.xlu0 %v124, 20
  %v128 = vpop.permute.xlu0 %127
  %129 = vrot.lane.b32.xlu0 %v123, 20
  %v130 = vpop.permute.xlu0 %129
  %v134 = vrot.slane %v54, 2
  %v135 = vrot.slane %v55, 2
  %v136 = vsel %vm75, %v134, %v135
  %v137 = vrot.slane %v56, 2
  %v138 = vsel %vm75, %v135, %v137
  %139 = vrot.lane.b32.xlu0 %v136, 40
  %v140 = vpop.permute.xlu0 %139
  %141 = vrot.lane.b32.xlu0 %v138, 40
  %v142 = vpop.permute.xlu0 %141
  %143 = vrot.lane.b32.xlu0 %v137, 40
  %v144 = vpop.permute.xlu0 %143
  %v148 = vrot.slane %v54, 3
  %v149 = vrot.slane %v55, 3
  %v150 = vsel %vm90, %v148, %v149
  %v151 = vrot.slane %v56, 3
  %v152 = vsel %vm90, %v149, %v151
  %153 = vrot.lane.b32.xlu0 %v150, 60
  %v154 = vpop.permute.xlu0 %153
  %155 = vrot.lane.b32.xlu0 %v152, 60
  %v156 = vpop.permute.xlu0 %155
  %157 = vrot.lane.b32.xlu0 %v151, 60
  %v158 = vpop.permute.xlu0 %157
  %v162 = vsel %vm105, %v54, %v126
  %v163 = vsel %vm105, %v55, %v128
  %v164 = vsel %vm105, %v56, %v130
  %v165 = vsel %vm109, %v162, %v140
  %v166 = vsel %vm109, %v163, %v142
  %v167 = vsel %vm109, %v164, %v144
  %v168 = vsel %vm113, %v165, %v154
  %v169 = vsel %vm113, %v166, %v156
  %v170 = vsel %vm113, %v167, %v158
  %v174 = vrot.slane %v168, 3
  %v175 = vrot.slane %v169, 3
  %v176 = vsel %vm90, %v174, %v175
  %v177 = vrot.slane %v170, 3
  %v178 = vsel %vm90, %v175, %v177
  %v180 = vsel %vm90, %v116, %v174
  %v181 = vld [vmem:[%s1] sm:$0xff]
  %v182 = vld [vmem:[%s1 + $0x8] sm:$0xff]
  %v183 = vld [vmem:[%s1 + $0x10] sm:$0xff]
  %v184 = vld [vmem:[%s1 + $0x18] sm:$0xff]
  %v185 = vld [vmem:[%s1 + $0x20] sm:$0xff]
  %v186 = vld [vmem:[%s1 + $0x28] sm:$0xff]
  %v187 = vld [vmem:[%s1 + $0x30] sm:$0xff]
  %v188 = vld [vmem:[%s1 + $0x38] sm:$0xff]
  %v189 = vld [vmem:[%s1 + $0x40] sm:$0xff]
  %v190 = vld [vmem:[%s1 + $0x48] sm:$0xff]
  %v191 = vld [vmem:[%s2] sm:$0x1]
  %v193 = vperm.slane %v191, 0
  %vm195 = vcmask 654336
  %v197 = vsel %vm195, %v114, 0
  %v200 = vsel %vm195, %v115, 0
  %v203 = vsel %vm195, %v180, 0
  %v205 = vsel %vm195, %v176, 0
  %v207 = vsel %vm195, %v178, 0
  %v209 = vsel %vm195, %v177, 0
  %211 = vmatpush.msra.mxu0 0.0
  %212 = vmatpush.msra.mxu0 0.0
  %213 = vmatpush.msra.mxu0 0.0
  %214 = vmatpush.msra.mxu0 0.0
  %215 = vmatpush.msra.mxu0 0.0
  %216 = vmatpush.msra.mxu0 0.0
  %217 = vmatpush.msra.mxu0 %v190
  %218 = vmatpush.msra.mxu0 %v189
  %219 = vmatpush.msra.mxu0 %v188
  %220 = vmatpush.msra.mxu0 %v187
  %221 = vmatpush.msra.mxu0 %v186
  %222 = vmatpush.msra.mxu0 %v185
  %223 = vmatpush.msra.mxu0 %v184
  %224 = vmatpush.msra.mxu0 %v183
  %225 = vmatpush.msra.mxu0 %v182
  %226 = vmatpush.msra.mxu0 %v181
  %227 = vmatmul.f32.gmra.mxu0 %v197
  %v228 = vpop.f32.mrf.mxu0
  %v229 = vadd.f32 %v193, %v228
  %230 = vmatmul.f32.gmra.mxu0 %v200
  %v231 = vpop.f32.mrf.mxu0
  %v232 = vadd.f32 %v193, %v231
  %233 = vmatmul.f32.gmra.mxu0 %v203
  %v234 = vpop.f32.mrf.mxu0
  %v235 = vadd.f32 %v193, %v234
  %236 = vmatmul.f32.gmra.mxu0 %v205
  %v237 = vpop.f32.mrf.mxu0
  %v238 = vadd.f32 %v193, %v237
  %239 = vmatmul.f32.gmra.mxu0 %v207
  %v240 = vpop.f32.mrf.mxu0
  %v241 = vadd.f32 %v193, %v240
  %242 = vmatmul.f32.gmra.mxu0 %v209
  %v243 = vpop.f32.mrf.mxu0
  %v244 = vadd.f32 %v193, %v243
  %245 = vdwg.mxu0
  %v249 = vrot.slane %v229, 1
  %v250 = vrot.slane %v232, 1
  %v251 = vsel %vm60, %v249, %v250
  %v252 = vrot.slane %v235, 1
  %v253 = vsel %vm60, %v250, %v252
  %254 = vrot.lane.b32.xlu0 %v251, 32
  %v255 = vpop.permute.xlu0 %254
  %256 = vrot.lane.b32.xlu0 %v253, 32
  %v257 = vpop.permute.xlu0 %256
  %258 = vrot.lane.b32.xlu0 %v252, 32
  %v259 = vpop.permute.xlu0 %258
  %v263 = vrot.slane %v229, 2
  %v264 = vrot.slane %v232, 2
  %v265 = vsel %vm75, %v263, %v264
  %v266 = vrot.slane %v235, 2
  %v267 = vsel %vm75, %v264, %v266
  %268 = vrot.lane.b32.xlu0 %v265, 64
  %v269 = vpop.permute.xlu0 %268
  %270 = vrot.lane.b32.xlu0 %v267, 64
  %v271 = vpop.permute.xlu0 %270
  %272 = vrot.lane.b32.xlu0 %v266, 64
  %v273 = vpop.permute.xlu0 %272
  %v277 = vrot.slane %v229, 3
  %v278 = vrot.slane %v232, 3
  %v279 = vsel %vm90, %v277, %v278
  %v280 = vrot.slane %v235, 3
  %v281 = vsel %vm90, %v278, %v280
  %282 = vrot.lane.b32.xlu0 %v279, 96
  %v283 = vpop.permute.xlu0 %282
  %284 = vrot.lane.b32.xlu0 %v281, 96
  %v285 = vpop.permute.xlu0 %284
  %286 = vrot.lane.b32.xlu0 %v280, 96
  %v287 = vpop.permute.xlu0 %286
  %vm291 = vcmask 261120
  %v292 = vsel %vm291, %v229, %v255
  %v293 = vsel %vm291, %v232, %v257
  %v294 = vsel %vm291, %v235, %v259
  %vm295 = vcmask 523264
  %v296 = vsel %vm295, %v292, %v269
  %v297 = vsel %vm295, %v293, %v271
  %v298 = vsel %vm295, %v294, %v273
  %vm299 = vcmask 785408
  %v300 = vsel %vm299, %v296, %v283
  %v301 = vsel %vm299, %v297, %v285
  %v302 = vsel %vm299, %v298, %v287
  %v305 = vrot.slane %v238, 1
  %v306 = vsel %vm60, %v252, %v305
  %v307 = vrot.slane %v241, 1
  %v308 = vsel %vm60, %v305, %v307
  %309 = vrot.lane.b32.xlu0 %v306, 32
  %v310 = vpop.permute.xlu0 %309
  %311 = vrot.lane.b32.xlu0 %v308, 32
  %v312 = vpop.permute.xlu0 %311
  %313 = vrot.lane.b32.xlu0 %v307, 32
  %v314 = vpop.permute.xlu0 %313
  %v319 = vrot.slane %v238, 2
  %v320 = vsel %vm75, %v266, %v319
  %v321 = vrot.slane %v241, 2
  %v322 = vsel %vm75, %v319, %v321
  %v323 = vrot.slane %v244, 2
  %v324 = vsel %vm75, %v321, %v323
  %325 = vrot.lane.b32.xlu0 %v320, 64
  %v326 = vpop.permute.xlu0 %325
  %327 = vrot.lane.b32.xlu0 %v322, 64
  %v328 = vpop.permute.xlu0 %327
  %329 = vrot.lane.b32.xlu0 %v324, 64
  %v330 = vpop.permute.xlu0 %329
  %v334 = vrot.slane %v238, 3
  %v335 = vrot.slane %v241, 3
  %v336 = vsel %vm90, %v334, %v335
  %v337 = vrot.slane %v244, 3
  %v338 = vsel %vm90, %v335, %v337
  %339 = vrot.lane.b32.xlu0 %v334, 96
  %v340 = vpop.permute.xlu0 %339
  %341 = vrot.lane.b32.xlu0 %v336, 96
  %v342 = vpop.permute.xlu0 %341
  %343 = vrot.lane.b32.xlu0 %v338, 96
  %v344 = vpop.permute.xlu0 %343
  %v348 = vsel %vm291, %v235, %v310
  %v349 = vsel %vm291, %v238, %v312
  %v350 = vsel %vm291, %v241, %v314
  %v351 = vsel %vm295, %v348, %v326
  %v352 = vsel %vm295, %v349, %v328
  %v353 = vsel %vm295, %v350, %v330
  %v354 = vsel %vm299, %v351, %v340
  %v355 = vsel %vm299, %v352, %v342
  %v356 = vsel %vm299, %v353, %v344
  %v360 = vrot.slane %v354, 3
  %v361 = vrot.slane %v355, 3
  %v362 = vsel %vm90, %v360, %v361
  %v363 = vrot.slane %v356, 3
  %v364 = vsel %vm90, %v361, %v363
  %vm368 = vcmask 1041408
  %v369 = vsel %vm368, %v302, %v362
  %v370 = vld [vmem:[%s3] sm:$0xff]
  %v371 = vld [vmem:[%s3 + $0x8] sm:$0xff]
  %v372 = vld [vmem:[%s3 + $0x10] sm:$0xff]
  %v373 = vld [vmem:[%s3 + $0x18] sm:$0xff]
  %v374 = vld [vmem:[%s3 + $0x20] sm:$0xff]
  %v375 = vld [vmem:[%s3 + $0x28] sm:$0xff]
  %v376 = vld [vmem:[%s3 + $0x30] sm:$0xff]
  %v377 = vld [vmem:[%s3 + $0x38] sm:$0xff]
  %v378 = vld [vmem:[%s3 + $0x40] sm:$0xff]
  %v379 = vld [vmem:[%s3 + $0x48] sm:$0xff]
  %v380 = vld [vmem:[%s3 + $0x50] sm:$0xff]
  %v381 = vld [vmem:[%s3 + $0x58] sm:$0xff]
  %v382 = vld [vmem:[%s3 + $0x60] sm:$0xff]
  %v383 = vld [vmem:[%s3 + $0x68] sm:$0xff]
  %v384 = vld [vmem:[%s3 + $0x70] sm:$0xff]
  %v385 = vld [vmem:[%s3 + $0x78] sm:$0xff]
  %v386 = vld [vmem:[%s4] sm:$0x1]
  %v388 = vperm.slane %v386, 0
  %390 = vmatpush.msra.mxu0 %v385
  %391 = vmatpush.msra.mxu0 %v384
  %392 = vmatpush.msra.mxu0 %v383
  %393 = vmatpush.msra.mxu0 %v382
  %394 = vmatpush.msra.mxu0 %v381
  %395 = vmatpush.msra.mxu0 %v380
  %396 = vmatpush.msra.mxu0 %v379
  %397 = vmatpush.msra.mxu0 %v378
  %398 = vmatpush.msra.mxu0 %v377
  %399 = vmatpush.msra.mxu0 %v376
  %400 = vmatpush.msra.mxu0 %v375
  %401 = vmatpush.msra.mxu0 %v374
  %402 = vmatpush.msra.mxu0 %v373
  %403 = vmatpush.msra.mxu0 %v372
  %404 = vmatpush.msra.mxu0 %v371
  %405 = vmatpush.msra.mxu0 %v370
  %406 = vmatmul.f32.gmra.mxu0 %v300
  %v407 = vpop.f32.mrf.mxu0
  %v408 = vadd.f32 %v388, %v407
  %409 = vmatmul.f32.gmra.mxu0 %v301
  %v410 = vpop.f32.mrf.mxu0
  %v411 = vadd.f32 %v388, %v410
  %412 = vmatmul.f32.gmra.mxu0 %v369
  %v413 = vpop.f32.mrf.mxu0
  %v414 = vadd.f32 %v388, %v413
  %415 = vmatmul.f32.gmra.mxu0 %v364
  %v416 = vpop.f32.mrf.mxu0
  %v417 = vadd.f32 %v388, %v416
  %418 = vmatmul.f32.gmra.mxu0 %v363
  %v419 = vpop.f32.mrf.mxu0
  %v420 = vadd.f32 %v388, %v419
  %421 = vdwg.mxu0
  %v424 = vrot.slane %v408, 1
  %v425 = vrot.slane %v411, 1
  %v426 = vsel %vm60, %v424, %v425
  %427 = vrot.lane.b32.xlu0 %v426, 64
  %v428 = vpop.permute.xlu0 %427
  %429 = vrot.lane.b32.xlu0 %v425, 64
  %v430 = vpop.permute.xlu0 %429
  %v434 = vrot.slane %v408, 2
  %v435 = vrot.slane %v411, 2
  %v436 = vsel %vm75, %v434, %v435
  %v437 = vrot.slane %v414, 2
  %v438 = vsel %vm75, %v435, %v437
  %v441 = vrot.slane %v408, 3
  %v442 = vrot.slane %v411, 3
  %v443 = vsel %vm90, %v441, %v442
  %v444 = vrot.slane %v414, 3
  %v445 = vsel %vm90, %v442, %v444
  %446 = vrot.lane.b32.xlu0 %v443, 64
  %v447 = vpop.permute.xlu0 %446
  %448 = vrot.lane.b32.xlu0 %v445, 64
  %v449 = vpop.permute.xlu0 %448
  %v452 = vsel %vm295, %v408, %v428
  %v453 = vsel %vm295, %v411, %v430
  %v454 = vsel %vm295, %v436, %v447
  %v455 = vsel %vm295, %v438, %v449
  %v458 = vrot.slane %v414, 1
  %v459 = vrot.slane %v417, 1
  %v460 = vsel %vm60, %v458, %v459
  %v461 = vrot.slane %v420, 1
  %v462 = vsel %vm60, %v459, %v461
  %463 = vrot.lane.b32.xlu0 %v460, 64
  %v464 = vpop.permute.xlu0 %463
  %465 = vrot.lane.b32.xlu0 %v462, 64
  %v466 = vpop.permute.xlu0 %465
  %467 = vrot.lane.b32.xlu0 %v461, 64
  %v468 = vpop.permute.xlu0 %467
  %v472 = vrot.slane %v417, 2
  %v473 = vsel %vm75, %v437, %v472
  %v474 = vrot.slane %v420, 2
  %v475 = vsel %vm75, %v472, %v474
  %v479 = vrot.slane %v417, 3
  %v480 = vsel %vm90, %v444, %v479
  %v481 = vrot.slane %v420, 3
  %v482 = vsel %vm90, %v479, %v481
  %483 = vrot.lane.b32.xlu0 %v480, 64
  %v484 = vpop.permute.xlu0 %483
  %485 = vrot.lane.b32.xlu0 %v482, 64
  %v486 = vpop.permute.xlu0 %485
  %487 = vrot.lane.b32.xlu0 %v481, 64
  %v488 = vpop.permute.xlu0 %487
  %v492 = vsel %vm295, %v414, %v464
  %v493 = vsel %vm295, %v417, %v466
  %v494 = vsel %vm295, %v420, %v468
  %v495 = vsel %vm295, %v473, %v484
  %v496 = vsel %vm295, %v475, %v486
  %v497 = vsel %vm295, %v474, %v488
  %v504 = vrot.slane %v492, 3
  %v505 = vrot.slane %v495, 3
  %v506 = vrot.slane %v493, 3
  %v507 = vsel %vm90, %v504, %v506
  %v508 = vrot.slane %v496, 3
  %v509 = vsel %vm90, %v505, %v508
  %v510 = vrot.slane %v494, 3
  %v511 = vsel %vm90, %v506, %v510
  %v512 = vrot.slane %v497, 3
  %v513 = vsel %vm90, %v508, %v512
  %v520 = vsel %vm60, %v453, %v504
  %v521 = vsel %vm60, %v455, %v505
  %v522 = vld [vmem:[%s5] sm:$0xff]
  %v523 = vld [vmem:[%s5 + $0x8] sm:$0xff]
  %v524 = vld [vmem:[%s5 + $0x10] sm:$0xff]
  %v525 = vld [vmem:[%s5 + $0x18] sm:$0xff]
  %v526 = vld [vmem:[%s5 + $0x20] sm:$0xff]
  %v527 = vld [vmem:[%s5 + $0x28] sm:$0xff]
  %v528 = vld [vmem:[%s5 + $0x30] sm:$0xff]
  %v529 = vld [vmem:[%s5 + $0x38] sm:$0xff]
  %v530 = vld [vmem:[%s5 + $0x40] sm:$0xff]
  %v531 = vld [vmem:[%s5 + $0x48] sm:$0xff]
  %v532 = vld [vmem:[%s5 + $0x50] sm:$0xff]
  %v533 = vld [vmem:[%s5 + $0x58] sm:$0xff]
  %v534 = vld [vmem:[%s5 + $0x60] sm:$0xff]
  %v535 = vld [vmem:[%s5 + $0x68] sm:$0xff]
  %v536 = vld [vmem:[%s5 + $0x70] sm:$0xff]
  %v537 = vld [vmem:[%s5 + $0x78] sm:$0xff]
  %v538 = vld [vmem:[%s5 + $0x80] sm:$0xff]
  %v539 = vld [vmem:[%s5 + $0x88] sm:$0xff]
  %v540 = vld [vmem:[%s5 + $0x90] sm:$0xff]
  %v541 = vld [vmem:[%s5 + $0x98] sm:$0xff]
  %v542 = vld [vmem:[%s5 + $0xa0] sm:$0xff]
  %v543 = vld [vmem:[%s5 + $0xa8] sm:$0xff]
  %v544 = vld [vmem:[%s5 + $0xb0] sm:$0xff]
  %v545 = vld [vmem:[%s5 + $0xb8] sm:$0xff]
  %v546 = vld [vmem:[%s5 + $0xc0] sm:$0xff]
  %v547 = vld [vmem:[%s5 + $0xc8] sm:$0xff]
  %v548 = vld [vmem:[%s5 + $0xd0] sm:$0xff]
  %v549 = vld [vmem:[%s5 + $0xd8] sm:$0xff]
  %v550 = vld [vmem:[%s5 + $0xe0] sm:$0xff]
  %v551 = vld [vmem:[%s5 + $0xe8] sm:$0xff]
  %v552 = vld [vmem:[%s5 + $0xf0] sm:$0xff]
  %v553 = vld [vmem:[%s5 + $0xf8] sm:$0xff]
  %v554 = vld [vmem:[%s6] sm:$0x1]
  %v556 = vperm.slane %v554, 0
  %558 = vmatpush.msra.mxu0 %v537
  %559 = vmatpush.msra.mxu0 %v536
  %560 = vmatpush.msra.mxu0 %v535
  %561 = vmatpush.msra.mxu0 %v534
  %562 = vmatpush.msra.mxu0 %v533
  %563 = vmatpush.msra.mxu0 %v532
  %564 = vmatpush.msra.mxu0 %v531
  %565 = vmatpush.msra.mxu0 %v530
  %566 = vmatpush.msra.mxu0 %v529
  %567 = vmatpush.msra.mxu0 %v528
  %568 = vmatpush.msra.mxu0 %v527
  %569 = vmatpush.msra.mxu0 %v526
  %570 = vmatpush.msra.mxu0 %v525
  %571 = vmatpush.msra.mxu0 %v524
  %572 = vmatpush.msra.mxu0 %v523
  %573 = vmatpush.msra.mxu0 %v522
  %574 = vmatmul.f32.gmra.mxu0 %v452
  %v575 = vpop.f32.mrf.mxu0
  %v576 = vadd.f32 %v556, %v575
  %577 = vmatmul.f32.gmra.mxu0 %v520
  %v578 = vpop.f32.mrf.mxu0
  %v579 = vadd.f32 %v556, %v578
  %580 = vmatmul.f32.gmra.mxu0 %v507
  %v581 = vpop.f32.mrf.mxu0
  %v582 = vadd.f32 %v556, %v581
  %583 = vmatmul.f32.gmra.mxu0 %v511
  %v584 = vpop.f32.mrf.mxu0
  %v585 = vadd.f32 %v556, %v584
  %586 = vdwg.mxu0
  %587 = vmatpush.msra.mxu0 %v553
  %588 = vmatpush.msra.mxu0 %v552
  %589 = vmatpush.msra.mxu0 %v551
  %590 = vmatpush.msra.mxu0 %v550
  %591 = vmatpush.msra.mxu0 %v549
  %592 = vmatpush.msra.mxu0 %v548
  %593 = vmatpush.msra.mxu0 %v547
  %594 = vmatpush.msra.mxu0 %v546
  %595 = vmatpush.msra.mxu0 %v545
  %596 = vmatpush.msra.mxu0 %v544
  %597 = vmatpush.msra.mxu0 %v543
  %598 = vmatpush.msra.mxu0 %v542
  %599 = vmatpush.msra.mxu0 %v541
  %600 = vmatpush.msra.mxu0 %v540
  %601 = vmatpush.msra.mxu0 %v539
  %602 = vmatpush.msra.mxu0 %v538
  %603 = vmatmul.f32.gmra.mxu0 %v454
  %v604 = vpop.f32.mrf.mxu0
  %v605 = vadd.f32 %v576, %v604
  %606 = vmatmul.f32.gmra.mxu0 %v521
  %v607 = vpop.f32.mrf.mxu0
  %v608 = vadd.f32 %v579, %v607
  %609 = vmatmul.f32.gmra.mxu0 %v509
  %v610 = vpop.f32.mrf.mxu0
  %v611 = vadd.f32 %v582, %v610
  %612 = vmatmul.f32.gmra.mxu0 %v513
  %v613 = vpop.f32.mrf.mxu0
  %v614 = vadd.f32 %v585, %v613
  %615 = vdwg.mxu0
  %v616 = vsel %vm60, %v608, 0.0
  %v617 = vadd.f32 %v605, %v616
  %v618 = vrot.slane %v617, 4
  %v619 = vadd.f32 %v617, %v618
  %v620 = vrot.slane %v619, 2
  %v621 = vadd.f32 %v619, %v620
  %v622 = vrot.slane %v621, 1
  %v623 = vadd.f32 %v621, %v622
  %v624 = vadd.f32 %v623, 0.0
  %vm628 = vcmask 1040384
  %v629 = vrot.slane %v608, 7
  %v630 = vrot.slane %v611, 7
  %v631 = vsel %vm628, %v629, %v630
  %v632 = vrot.slane %v614, 7
  %v633 = vsel %vm628, %v630, %v632
  %v636 = vsel %vm60, %v633, 0.0
  %v637 = vadd.f32 %v631, %v636
  %v638 = vrot.slane %v637, 4
  %v639 = vadd.f32 %v637, %v638
  %v640 = vrot.slane %v639, 2
  %v641 = vadd.f32 %v639, %v640
  %v642 = vrot.slane %v641, 1
  %v643 = vadd.f32 %v641, %v642
  %v644 = vadd.f32 %v624, %v643
  %v645 = vrcp.pop 30.0
  %v646 = vmul.f32 30.0, %v645
  %v647 = vsub.f32 1.0, %v646
  %v648 = vmul.f32 %v645, %v647
  %v649 = vadd.f32 %v645, %v648
  %vm650 = vweird.f32 %v645
  %v651 = vsel %vm650, %v645, %v649
  %v652 = vmul.f32 %v644, %v651
  %v653 = vsub.f32 %v605, %v652
  %v654 = vsub.f32 %v608, %v652
  %v655 = vmul.f32 %v653, %v653
  %v656 = vmul.f32 %v654, %v654
  %v657 = vsel %vm60, %v656, 0.0
  %v658 = vadd.f32 %v655, %v657
  %v659 = vrot.slane %v658, 4
  %v660 = vadd.f32 %v658, %v659
  %v661 = vrot.slane %v660, 2
  %v662 = vadd.f32 %v660, %v661
  %v663 = vrot.slane %v662, 1
  %v664 = vadd.f32 %v662, %v663
  %v665 = vadd.f32 %v664, 0.0
  %v666 = vsub.f32 %v611, %v652
  %v667 = vsub.f32 %v614, %v652
  %v668 = vmul.f32 %v666, %v666
  %v669 = vmul.f32 %v667, %v667
  %v673 = vrot.slane %v656, 7
  %v674 = vrot.slane %v668, 7
  %v675 = vsel %vm628, %v673, %v674
  %v676 = vrot.slane %v669, 7
  %v677 = vsel %vm628, %v674, %v676
  %v680 = vsel %vm60, %v677, 0.0
  %v681 = vadd.f32 %v675, %v680
  %v682 = vrot.slane %v681, 4
  %v683 = vadd.f32 %v681, %v682
  %v684 = vrot.slane %v683, 2
  %v685 = vadd.f32 %v683, %v684
  %v686 = vrot.slane %v685, 1
  %v687 = vadd.f32 %v685, %v686
  %v688 = vadd.f32 %v665, %v687
  %v689 = vmul.f32 %v688, %v651
  %v690 = vadd.f32 %v689, 1e-05
  %v691 = vrsqrt.pop %v690
  %v692 = vmul.f32 %v691, %v690
  %v693 = vmul.f32 %v692, %v691
  %v694 = vmul.f32 0.5, %v693
  %v695 = vsub.f32 1.5, %v694
  %v696 = vmul.f32 %v691, %v695
  %vm697 = vweird.f32 %v690
  %vm698 = vweird.f32 %v691
  %vm699 = vmor %vm697, %vm698
  %v700 = vsel %vm699, %v691, %v696
  %v701 = vld [vmem:[%s7] sm:$0x1]
  %v702 = vmul.f32 %v700, %v701
  %v703 = vld [vmem:[%s8] sm:$0x1]
  %v704 = vmul.f32 %v652, %v702
  %v705 = vsub.f32 %v703, %v704
  %v706 = vperm.slane %v702, 0
  %v707 = vmul.f32 %v605, %v706
  %v708 = vmul.f32 %v608, %v706
  %v710 = vperm.slane %v705, 0
  %v712 = vadd.f32 %v707, %v710
  %v713 = vadd.f32 %v708, %v710
  %v714 = vmul.f32 %v611, %v706
  %v715 = vmul.f32 %v614, %v706
  %v716 = vadd.f32 %v714, %v710
  %v717 = vadd.f32 %v715, %v710
  %v720 = vrot.slane %v712, 7
  %v721 = vrot.slane %v713, 7
  %v722 = vsel %vm628, %v720, %v721
  %vm725 = vcmp.gt.f32.partialorder %v712, %v720
  %vm726 = vcmp.gt.f32.partialorder %v713, %v722
  %v727 = vsel %vm725, 1, 0
  %v728 = vsel %vm726, 1, 0
  %v729 = vsel %vm725, %v712, %v720
  %v730 = vsel %vm726, %v713, %v722
  %v733 = vrot.slane %v729, 7
  %v734 = vrot.slane %v730, 7
  %v735 = vsel %vm628, %v733, %v734
  %vm738 = vcmp.gt.f32.partialorder %v712, %v733
  %vm739 = vcmp.gt.f32.partialorder %v713, %v735
  %v740 = vrot.slane %v727, 7
  %v741 = vrot.slane %v728, 7
  %v742 = vsel %vm628, %v740, %v741
  %v743 = vsel %vm738, 2, %v740
  %v744 = vsel %vm739, 2, %v742
  %v745 = vsel %vm738, %v712, %v733
  %v746 = vsel %vm739, %v713, %v735
  %v749 = vrot.slane %v745, 7
  %v750 = vrot.slane %v746, 7
  %v751 = vsel %vm628, %v749, %v750
  %vm754 = vcmp.gt.f32.partialorder %v712, %v749
  %vm755 = vcmp.gt.f32.partialorder %v713, %v751
  %v756 = vrot.slane %v743, 7
  %v757 = vrot.slane %v744, 7
  %v758 = vsel %vm628, %v756, %v757
  %v759 = vsel %vm754, 3, %v756
  %v760 = vsel %vm755, 3, %v758
  %v761 = vsel %vm754, %v712, %v749
  %v762 = vsel %vm755, %v713, %v751
  %vm763 = vcmask 1042432
  %v764 = vsel %vm763, 0.0, %v761
  %v765 = vsel %vm60, %v762, 0.0
  %v766 = vsel %vm763, 4294967295, %v759
  %v767 = vsel %vm60, %v760, 4294967295
  %vm768 = vcmp.eq.s32.totalorder %v766, 0
  %vm769 = vcmp.eq.s32.totalorder %v767, 0
  %v770 = vsel %vm768, %v764, 0.0
  %v771 = vsel %vm769, %v765, 0.0
  %vm772 = vcmp.eq.s32.totalorder %v766, 1
  %vm773 = vcmp.eq.s32.totalorder %v767, 1
  %v777 = vrot.slane %v770, 1
  %v778 = vrot.slane %v771, 1
  %v779 = vsel %vm60, %v777, %v778
  %v780 = vrot.slane 0.0, 1
  %v781 = vsel %vm60, %v778, %v780
  %v784 = vsel %vm772, %v764, %v779
  %v785 = vsel %vm773, %v765, %v781
  %vm786 = vcmp.eq.s32.totalorder %v766, 2
  %vm787 = vcmp.eq.s32.totalorder %v767, 2
  %v790 = vrot.slane %v784, 1
  %v791 = vrot.slane %v785, 1
  %v792 = vsel %vm60, %v790, %v791
  %v793 = vrot.slane %v780, 1
  %v794 = vsel %vm60, %v791, %v793
  %v797 = vsel %vm786, %v764, %v792
  %v798 = vsel %vm787, %v765, %v794
  %vm799 = vcmp.eq.s32.totalorder %v766, 3
  %vm800 = vcmp.eq.s32.totalorder %v767, 3
  %v803 = vrot.slane %v797, 1
  %v804 = vrot.slane %v798, 1
  %v805 = vsel %vm60, %v803, %v804
  %v808 = vsel %vm799, %v764, %v805
  %v809 = vsel %vm800, %v765, %v804
  %v812 = vrot.slane %v716, 7
  %v813 = vsel %vm628, %v721, %v812
  %v814 = vrot.slane %v717, 7
  %v815 = vsel %vm628, %v812, %v814
  %vm818 = vcmp.gt.f32.partialorder %v716, %v813
  %vm819 = vcmp.gt.f32.partialorder %v717, %v815
  %v820 = vsel %vm818, 1, 0
  %v821 = vsel %vm819, 1, 0
  %v822 = vsel %vm818, %v716, %v813
  %v823 = vsel %vm819, %v717, %v815
  %v826 = vrot.slane %v822, 7
  %v827 = vrot.slane %v823, 7
  %v828 = vsel %vm628, %v826, %v827
  %vm831 = vcmp.gt.f32.partialorder %v716, %v826
  %vm832 = vcmp.gt.f32.partialorder %v717, %v828
  %v833 = vrot.slane %v820, 7
  %v834 = vrot.slane %v821, 7
  %v835 = vsel %vm628, %v833, %v834
  %v836 = vsel %vm831, 2, %v833
  %v837 = vsel %vm832, 2, %v835
  %v838 = vsel %vm831, %v716, %v826
  %v839 = vsel %vm832, %v717, %v828
  %v842 = vrot.slane %v838, 7
  %v843 = vrot.slane %v839, 7
  %v844 = vsel %vm628, %v842, %v843
  %vm847 = vcmp.gt.f32.partialorder %v716, %v842
  %vm848 = vcmp.gt.f32.partialorder %v717, %v844
  %v849 = vrot.slane %v836, 7
  %v850 = vrot.slane %v837, 7
  %v851 = vsel %vm628, %v849, %v850
  %v852 = vsel %vm847, 3, %v849
  %v853 = vsel %vm848, 3, %v851
  %v854 = vsel %vm847, %v716, %v842
  %v855 = vsel %vm848, %v717, %v844
  %v858 = vrot.slane %v854, 7
  %v859 = vrot.slane %v855, 7
  %v860 = vsel %vm628, %v858, %v859
  %v863 = vsel %vm763, 0.0, %v858
  %v864 = vsel %vm60, %v860, 0.0
  %v865 = vrot.slane %v852, 7
  %v866 = vrot.slane %v853, 7
  %v867 = vsel %vm628, %v865, %v866
  %v868 = vsel %vm763, 4294967295, %v865
  %v869 = vsel %vm60, %v867, 4294967295
  %vm870 = vcmp.eq.s32.totalorder %v868, 0
  %vm871 = vcmp.eq.s32.totalorder %v869, 0
  %v872 = vsel %vm870, %v863, 0.0
  %v873 = vsel %vm871, %v864, 0.0
  %vm874 = vcmp.eq.s32.totalorder %v868, 1
  %vm875 = vcmp.eq.s32.totalorder %v869, 1
  %v878 = vrot.slane %v872, 1
  %v879 = vrot.slane %v873, 1
  %v880 = vsel %vm60, %v878, %v879
  %v881 = vsel %vm60, %v879, %v780
  %v884 = vsel %vm874, %v863, %v880
  %v885 = vsel %vm875, %v864, %v881
  %vm886 = vcmp.eq.s32.totalorder %v868, 2
  %vm887 = vcmp.eq.s32.totalorder %v869, 2
  %v890 = vrot.slane %v884, 1
  %v891 = vrot.slane %v885, 1
  %v892 = vsel %vm60, %v890, %v891
  %v893 = vsel %vm60, %v891, %v793
  %v896 = vsel %vm886, %v863, %v892
  %v897 = vsel %vm887, %v864, %v893
  %vm898 = vcmp.eq.s32.totalorder %v868, 3
  %vm899 = vcmp.eq.s32.totalorder %v869, 3
  %v902 = vrot.slane %v896, 1
  %v903 = vrot.slane %v897, 1
  %v904 = vsel %vm60, %v902, %v903
  %v907 = vsel %vm898, %v863, %v904
  %v908 = vsel %vm899, %v864, %v903
  %v911 = vrot.slane %v808, 5
  %v912 = vrot.slane %v809, 5
  %v913 = vsel %vm763, %v911, %v912
  %v917 = vsel %vm763, 0.0, %v911
  %v918 = vsel %vm368, %v912, 0.0
  %v921 = vrot.slane %v907, 5
  %v922 = vrot.slane %v908, 5
  %v923 = vsel %vm763, %v921, %v922
  %v926 = vsel %vm763, 0.0, %v921
  %v927 = vsel %vm368, %v922, 0.0
  %v930 = vrot.slane %v917, 1
  %v931 = vrot.slane %v913, 1
  %v932 = vsel %vm60, %v930, %v931
  %v933 = vrot.slane %v918, 1
  %v934 = vsel %vm60, %v931, %v933
  %v938 = vrot.slane %v917, 2
  %v939 = vrot.slane %v913, 2
  %v940 = vsel %vm75, %v938, %v939
  %v941 = vrot.slane %v918, 2
  %v942 = vsel %vm75, %v939, %v941
  %v946 = vrot.slane %v917, 3
  %v947 = vrot.slane %v913, 3
  %v948 = vsel %vm90, %v946, %v947
  %v949 = vrot.slane %v918, 3
  %v950 = vsel %vm90, %v947, %v949
  %v956 = vrot.slane %v926, 1
  %v957 = vrot.slane %v923, 1
  %v958 = vsel %vm60, %v956, %v957
  %v959 = vrot.slane %v927, 1
  %v960 = vsel %vm60, %v957, %v959
  %v961 = vrot.slane %v926, 2
  %v962 = vrot.slane %v923, 2
  %v963 = vsel %vm75, %v961, %v962
  %v964 = vrot.slane %v927, 2
  %v965 = vsel %vm75, %v962, %v964
  %v966 = vrot.slane %v926, 3
  %v967 = vrot.slane %v923, 3
  %v968 = vsel %vm90, %v966, %v967
  %v969 = vrot.slane %v927, 3
  %v970 = vsel %vm90, %v967, %v969
  %v971 = vrot.slane %v926, 6
  %v972 = vrot.slane %v958, 6
  %v973 = vrot.slane %v963, 6
  %v974 = vrot.slane %v968, 6
  %v975 = vrot.slane %v923, 6
  %v976 = vsel %vm368, %v971, %v975
  %v977 = vrot.slane %v960, 6
  %v978 = vsel %vm368, %v972, %v977
  %v979 = vrot.slane %v965, 6
  %v980 = vsel %vm368, %v973, %v979
  %v981 = vrot.slane %v970, 6
  %v982 = vsel %vm368, %v974, %v981
  %v983 = vrot.slane %v927, 6
  %v984 = vsel %vm368, %v975, %v983
  %v985 = vrot.slane %v959, 6
  %v986 = vsel %vm368, %v977, %v985
  %v987 = vrot.slane %v964, 6
  %v988 = vsel %vm368, %v979, %v987
  %v989 = vrot.slane %v969, 6
  %v990 = vsel %vm368, %v981, %v989
  %v1003 = vsel %vm368, %v918, %v971
  %v1004 = vsel %vm368, %v933, %v972
  %v1005 = vsel %vm368, %v941, %v973
  %v1006 = vsel %vm368, %v949, %v974
  %v1007 = vld [vmem:[%s9] sm:$0xff]
  %v1008 = vld [vmem:[%s9 + $0x8] sm:$0xff]
  %v1009 = vld [vmem:[%s9 + $0x10] sm:$0xff]
  %v1010 = vld [vmem:[%s9 + $0x18] sm:$0xff]
  %v1011 = vld [vmem:[%s9 + $0x20] sm:$0xff]
  %v1012 = vld [vmem:[%s9 + $0x28] sm:$0xff]
  %v1013 = vld [vmem:[%s9 + $0x30] sm:$0xff]
  %v1014 = vld [vmem:[%s9 + $0x38] sm:$0xff]
  %v1015 = vld [vmem:[%s9 + $0x40] sm:$0xff]
  %v1016 = vld [vmem:[%s9 + $0x48] sm:$0xff]
  %v1017 = vld [vmem:[%s9 + $0x50] sm:$0xff]
  %v1018 = vld [vmem:[%s9 + $0x58] sm:$0xff]
  %v1019 = vld [vmem:[%s9 + $0x60] sm:$0xff]
  %v1020 = vld [vmem:[%s9 + $0x68] sm:$0xff]
  %v1021 = vld [vmem:[%s9 + $0x70] sm:$0xff]
  %v1022 = vld [vmem:[%s9 + $0x78] sm:$0xff]
  %v1023 = vld [vmem:[%s9 + $0x80] sm:$0xff]
  %v1024 = vld [vmem:[%s9 + $0x88] sm:$0xff]
  %v1025 = vld [vmem:[%s9 + $0x90] sm:$0xff]
  %v1026 = vld [vmem:[%s9 + $0x98] sm:$0xff]
  %v1027 = vld [vmem:[%s9 + $0xa0] sm:$0xff]
  %v1028 = vld [vmem:[%s9 + $0xa8] sm:$0xff]
  %v1029 = vld [vmem:[%s9 + $0xb0] sm:$0xff]
  %v1030 = vld [vmem:[%s9 + $0xb8] sm:$0xff]
  %v1031 = vld [vmem:[%s9 + $0xc0] sm:$0xff]
  %v1032 = vld [vmem:[%s9 + $0xc8] sm:$0xff]
  %v1033 = vld [vmem:[%s9 + $0xd0] sm:$0xff]
  %v1034 = vld [vmem:[%s9 + $0xd8] sm:$0xff]
  %v1035 = vld [vmem:[%s9 + $0xe0] sm:$0xff]
  %v1036 = vld [vmem:[%s9 + $0xe8] sm:$0xff]
  %v1037 = vld [vmem:[%s9 + $0xf0] sm:$0xff]
  %v1038 = vld [vmem:[%s9 + $0xf8] sm:$0xff]
  %v1039 = vld [vmem:[%s9 + $0x100] sm:$0xff]
  %v1040 = vld [vmem:[%s9 + $0x108] sm:$0xff]
  %v1041 = vld [vmem:[%s9 + $0x110] sm:$0xff]
  %v1042 = vld [vmem:[%s9 + $0x118] sm:$0xff]
  %v1043 = vld [vmem:[%s9 + $0x120] sm:$0xff]
  %v1044 = vld [vmem:[%s9 + $0x128] sm:$0xff]
  %v1045 = vld [vmem:[%s9 + $0x130] sm:$0xff]
  %v1046 = vld [vmem:[%s9 + $0x138] sm:$0xff]
  %v1047 = vld [vmem:[%s9 + $0x140] sm:$0xff]
  %v1048 = vld [vmem:[%s9 + $0x148] sm:$0xff]
  %v1049 = vld [vmem:[%s9 + $0x150] sm:$0xff]
  %v1050 = vld [vmem:[%s9 + $0x158] sm:$0xff]
  %v1051 = vld [vmem:[%s9 + $0x160] sm:$0xff]
  %v1052 = vld [vmem:[%s9 + $0x168] sm:$0xff]
  %v1053 = vld [vmem:[%s9 + $0x170] sm:$0xff]
  %v1054 = vld [vmem:[%s9 + $0x178] sm:$0xff]
  %v1055 = vld [vmem:[%s9 + $0x180] sm:$0xff]
  %v1056 = vld [vmem:[%s9 + $0x188] sm:$0xff]
  %v1057 = vld [vmem:[%s9 + $0x190] sm:$0xff]
  %v1058 = vld [vmem:[%s9 + $0x198] sm:$0xff]
  %v1059 = vld [vmem:[%s9 + $0x1a0] sm:$0xff]
  %v1060 = vld [vmem:[%s9 + $0x1a8] sm:$0xff]
  %v1061 = vld [vmem:[%s9 + $0x1b0] sm:$0xff]
  %v1062 = vld [vmem:[%s9 + $0x1b8] sm:$0xff]
  %v1063 = vld [vmem:[%s9 + $0x1c0] sm:$0xff]
  %v1064 = vld [vmem:[%s9 + $0x1c8] sm:$0xff]
  %v1065 = vld [vmem:[%s9 + $0x1d0] sm:$0xff]
  %v1066 = vld [vmem:[%s9 + $0x1d8] sm:$0xff]
  %v1067 = vld [vmem:[%s9 + $0x1e0] sm:$0xff]
  %v1068 = vld [vmem:[%s9 + $0x1e8] sm:$0xff]
  %v1069 = vld [vmem:[%s9 + $0x1f0] sm:$0xff]
  %v1070 = vld [vmem:[%s9 + $0x1f8] sm:$0xff]
  %v1071 = vld [vmem:[%s10] sm:$0x1]
  %v1073 = vperm.slane %v1071, 0
  %1075 = vmatpush.msra.mxu0 %v1022
  %1076 = vmatpush.msra.mxu0 %v1021
  %1077 = vmatpush.msra.mxu0 %v1020
  %1078 = vmatpush.msra.mxu0 %v1019
  %1079 = vmatpush.msra.mxu0 %v1018
  %1080 = vmatpush.msra.mxu0 %v1017
  %1081 = vmatpush.msra.mxu0 %v1016
  %1082 = vmatpush.msra.mxu0 %v1015
  %1083 = vmatpush.msra.mxu0 %v1014
  %1084 = vmatpush.msra.mxu0 %v1013
  %1085 = vmatpush.msra.mxu0 %v1012
  %1086 = vmatpush.msra.mxu0 %v1011
  %1087 = vmatpush.msra.mxu0 %v1010
  %1088 = vmatpush.msra.mxu0 %v1009
  %1089 = vmatpush.msra.mxu0 %v1008
  %1090 = vmatpush.msra.mxu0 %v1007
  %1091 = vmatmul.f32.gmra.mxu0 %v917
  %v1092 = vpop.f32.mrf.mxu0
  %v1093 = vadd.f32 %v1073, %v1092
  %1094 = vmatmul.f32.gmra.mxu0 %v913
  %v1095 = vpop.f32.mrf.mxu0
  %v1096 = vadd.f32 %v1073, %v1095
  %1097 = vmatmul.f32.gmra.mxu0 %v1003
  %v1098 = vpop.f32.mrf.mxu0
  %v1099 = vadd.f32 %v1073, %v1098
  %1100 = vmatmul.f32.gmra.mxu0 %v976
  %v1101 = vpop.f32.mrf.mxu0
  %v1102 = vadd.f32 %v1073, %v1101
  %1103 = vmatmul.f32.gmra.mxu0 %v984
  %v1104 = vpop.f32.mrf.mxu0
  %v1105 = vadd.f32 %v1073, %v1104
  %1106 = vdwg.mxu0
  %1107 = vmatpush.msra.mxu0 %v1038
  %1108 = vmatpush.msra.mxu0 %v1037
  %1109 = vmatpush.msra.mxu0 %v1036
  %1110 = vmatpush.msra.mxu0 %v1035
  %1111 = vmatpush.msra.mxu0 %v1034
  %1112 = vmatpush.msra.mxu0 %v1033
  %1113 = vmatpush.msra.mxu0 %v1032
  %1114 = vmatpush.msra.mxu0 %v1031
  %1115 = vmatpush.msra.mxu0 %v1030
  %1116 = vmatpush.msra.mxu0 %v1029
  %1117 = vmatpush.msra.mxu0 %v1028
  %1118 = vmatpush.msra.mxu0 %v1027
  %1119 = vmatpush.msra.mxu0 %v1026
  %1120 = vmatpush.msra.mxu0 %v1025
  %1121 = vmatpush.msra.mxu0 %v1024
  %1122 = vmatpush.msra.mxu0 %v1023
  %1123 = vmatmul.f32.gmra.mxu0 %v932
  %v1124 = vpop.f32.mrf.mxu0
  %v1125 = vadd.f32 %v1093, %v1124
  %1126 = vmatmul.f32.gmra.mxu0 %v934
  %v1127 = vpop.f32.mrf.mxu0
  %v1128 = vadd.f32 %v1096, %v1127
  %1129 = vmatmul.f32.gmra.mxu0 %v1004
  %v1130 = vpop.f32.mrf.mxu0
  %v1131 = vadd.f32 %v1099, %v1130
  %1132 = vmatmul.f32.gmra.mxu0 %v978
  %v1133 = vpop.f32.mrf.mxu0
  %v1134 = vadd.f32 %v1102, %v1133
  %1135 = vmatmul.f32.gmra.mxu0 %v986
  %v1136 = vpop.f32.mrf.mxu0
  %v1137 = vadd.f32 %v1105, %v1136
  %1138 = vdwg.mxu0
  %1139 = vmatpush.msra.mxu0 %v1054
  %1140 = vmatpush.msra.mxu0 %v1053
  %1141 = vmatpush.msra.mxu0 %v1052
  %1142 = vmatpush.msra.mxu0 %v1051
  %1143 = vmatpush.msra.mxu0 %v1050
  %1144 = vmatpush.msra.mxu0 %v1049
  %1145 = vmatpush.msra.mxu0 %v1048
  %1146 = vmatpush.msra.mxu0 %v1047
  %1147 = vmatpush.msra.mxu0 %v1046
  %1148 = vmatpush.msra.mxu0 %v1045
  %1149 = vmatpush.msra.mxu0 %v1044
  %1150 = vmatpush.msra.mxu0 %v1043
  %1151 = vmatpush.msra.mxu0 %v1042
  %1152 = vmatpush.msra.mxu0 %v1041
  %1153 = vmatpush.msra.mxu0 %v1040
  %1154 = vmatpush.msra.mxu0 %v1039
  %1155 = vmatmul.f32.gmra.mxu0 %v940
  %v1156 = vpop.f32.mrf.mxu0
  %v1157 = vadd.f32 %v1125, %v1156
  %1158 = vmatmul.f32.gmra.mxu0 %v942
  %v1159 = vpop.f32.mrf.mxu0
  %v1160 = vadd.f32 %v1128, %v1159
  %1161 = vmatmul.f32.gmra.mxu0 %v1005
  %v1162 = vpop.f32.mrf.mxu0
  %v1163 = vadd.f32 %v1131, %v1162
  %1164 = vmatmul.f32.gmra.mxu0 %v980
  %v1165 = vpop.f32.mrf.mxu0
  %v1166 = vadd.f32 %v1134, %v1165
  %1167 = vmatmul.f32.gmra.mxu0 %v988
  %v1168 = vpop.f32.mrf.mxu0
  %v1169 = vadd.f32 %v1137, %v1168
  %1170 = vdwg.mxu0
  %1171 = vmatpush.msra.mxu0 %v1070
  %1172 = vmatpush.msra.mxu0 %v1069
  %1173 = vmatpush.msra.mxu0 %v1068
  %1174 = vmatpush.msra.mxu0 %v1067
  %1175 = vmatpush.msra.mxu0 %v1066
  %1176 = vmatpush.msra.mxu0 %v1065
  %1177 = vmatpush.msra.mxu0 %v1064
  %1178 = vmatpush.msra.mxu0 %v1063
  %1179 = vmatpush.msra.mxu0 %v1062
  %1180 = vmatpush.msra.mxu0 %v1061
  %1181 = vmatpush.msra.mxu0 %v1060
  %1182 = vmatpush.msra.mxu0 %v1059
  %1183 = vmatpush.msra.mxu0 %v1058
  %1184 = vmatpush.msra.mxu0 %v1057
  %1185 = vmatpush.msra.mxu0 %v1056
  %1186 = vmatpush.msra.mxu0 %v1055
  %1187 = vmatmul.f32.gmra.mxu0 %v948
  %v1188 = vpop.f32.mrf.mxu0
  %v1189 = vadd.f32 %v1157, %v1188
  %1190 = vmatmul.f32.gmra.mxu0 %v950
  %v1191 = vpop.f32.mrf.mxu0
  %v1192 = vadd.f32 %v1160, %v1191
  %1193 = vmatmul.f32.gmra.mxu0 %v1006
  %v1194 = vpop.f32.mrf.mxu0
  %v1195 = vadd.f32 %v1163, %v1194
  %1196 = vmatmul.f32.gmra.mxu0 %v982
  %v1197 = vpop.f32.mrf.mxu0
  %v1198 = vadd.f32 %v1166, %v1197
  %1199 = vmatmul.f32.gmra.mxu0 %v990
  %v1200 = vpop.f32.mrf.mxu0
  %v1201 = vadd.f32 %v1169, %v1200
  %1202 = vdwg.mxu0
  %v1206 = vrot.slane %v1189, 5
  %v1207 = vrot.slane %v1192, 5
  %v1208 = vsel %vm763, %v1206, %v1207
  %v1209 = vrot.slane %v1195, 5
  %v1210 = vsel %vm763, %v1207, %v1209
  %v1214 = vsel %vm763, 0.0, %v1206
  %v1215 = vsel %vm90, %v1210, 0.0
  %v1218 = vrot.slane %v1195, 7
  %v1219 = vrot.slane %v1198, 7
  %v1220 = vsel %vm628, %v1218, %v1219
  %v1221 = vrot.slane %v1201, 7
  %v1222 = vsel %vm628, %v1219, %v1221
  %v1226 = vsel %vm763, 0.0, %v1218
  %v1227 = vsel %vm90, %v1222, 0.0
  %v1230 = vrot.slane %v1214, 1
  %v1231 = vrot.slane %v1208, 1
  %v1232 = vsel %vm60, %v1230, %v1231
  %v1233 = vrot.slane %v1215, 1
  %v1234 = vsel %vm60, %v1231, %v1233
  %1235 = vrot.lane.b32.xlu0 %v1232, 64
  %v1236 = vpop.permute.xlu0 %1235
  %1237 = vrot.lane.b32.xlu0 %v1234, 64
  %v1238 = vpop.permute.xlu0 %1237
  %1239 = vrot.lane.b32.xlu0 %v1233, 64
  %v1240 = vpop.permute.xlu0 %1239
  %v1244 = vrot.slane %v1214, 2
  %v1245 = vrot.slane %v1208, 2
  %v1246 = vsel %vm75, %v1244, %v1245
  %v1247 = vrot.slane %v1215, 2
  %v1248 = vsel %vm75, %v1245, %v1247
  %v1252 = vrot.slane %v1214, 3
  %v1253 = vrot.slane %v1208, 3
  %v1254 = vsel %vm90, %v1252, %v1253
  %v1255 = vrot.slane %v1215, 3
  %v1256 = vsel %vm90, %v1253, %v1255
  %1257 = vrot.lane.b32.xlu0 %v1254, 64
  %v1258 = vpop.permute.xlu0 %1257
  %1259 = vrot.lane.b32.xlu0 %v1256, 64
  %v1260 = vpop.permute.xlu0 %1259
  %1261 = vrot.lane.b32.xlu0 %v1255, 64
  %v1262 = vpop.permute.xlu0 %1261
  %v1266 = vsel %vm295, %v1214, %v1236
  %v1267 = vsel %vm295, %v1208, %v1238
  %v1268 = vsel %vm295, %v1215, %v1240
  %v1269 = vsel %vm295, %v1246, %v1258
  %v1270 = vsel %vm295, %v1248, %v1260
  %v1271 = vsel %vm295, %v1247, %v1262
  %v1274 = vrot.slane %v1226, 1
  %v1275 = vrot.slane %v1220, 1
  %v1276 = vsel %vm60, %v1274, %v1275
  %v1277 = vrot.slane %v1227, 1
  %v1278 = vsel %vm60, %v1275, %v1277
  %1279 = vrot.lane.b32.xlu0 %v1276, 64
  %v1280 = vpop.permute.xlu0 %1279
  %1281 = vrot.lane.b32.xlu0 %v1278, 64
  %v1282 = vpop.permute.xlu0 %1281
  %1283 = vrot.lane.b32.xlu0 %v1277, 64
  %v1284 = vpop.permute.xlu0 %1283
  %v1288 = vrot.slane %v1226, 2
  %v1289 = vrot.slane %v1220, 2
  %v1290 = vsel %vm75, %v1288, %v1289
  %v1291 = vrot.slane %v1227, 2
  %v1292 = vsel %vm75, %v1289, %v1291
  %v1296 = vrot.slane %v1226, 3
  %v1297 = vrot.slane %v1220, 3
  %v1298 = vsel %vm90, %v1296, %v1297
  %v1299 = vrot.slane %v1227, 3
  %v1300 = vsel %vm90, %v1297, %v1299
  %1301 = vrot.lane.b32.xlu0 %v1298, 64
  %v1302 = vpop.permute.xlu0 %1301
  %1303 = vrot.lane.b32.xlu0 %v1300, 64
  %v1304 = vpop.permute.xlu0 %1303
  %1305 = vrot.lane.b32.xlu0 %v1299, 64
  %v1306 = vpop.permute.xlu0 %1305
  %v1310 = vsel %vm295, %v1226, %v1280
  %v1311 = vsel %vm295, %v1220, %v1282
  %v1312 = vsel %vm295, %v1227, %v1284
  %v1313 = vsel %vm295, %v1290, %v1302
  %v1314 = vsel %vm295, %v1292, %v1304
  %v1315 = vsel %vm295, %v1291, %v1306
  %v1322 = vrot.slane %v1310, 3
  %v1323 = vrot.slane %v1313, 3
  %v1324 = vrot.slane %v1311, 3
  %v1325 = vsel %vm90, %v1322, %v1324
  %v1326 = vrot.slane %v1314, 3
  %v1327 = vsel %vm90, %v1323, %v1326
  %v1328 = vrot.slane %v1312, 3
  %v1329 = vsel %vm90, %v1324, %v1328
  %v1330 = vrot.slane %v1315, 3
  %v1331 = vsel %vm90, %v1326, %v1330
  %v1340 = vsel %vm90, %v1268, %v1322
  %v1341 = vsel %vm90, %v1271, %v1323
  %v1342 = vld [vmem:[%s11] sm:$0xff]
  %v1343 = vld [vmem:[%s11 + $0x8] sm:$0xff]
  %v1344 = vld [vmem:[%s11 + $0x10] sm:$0xff]
  %v1345 = vld [vmem:[%s11 + $0x18] sm:$0xff]
  %v1346 = vld [vmem:[%s11 + $0x20] sm:$0xff]
  %v1347 = vld [vmem:[%s11 + $0x28] sm:$0xff]
  %v1348 = vld [vmem:[%s11 + $0x30] sm:$0xff]
  %v1349 = vld [vmem:[%s11 + $0x38] sm:$0xff]
  %v1350 = vld [vmem:[%s11 + $0x40] sm:$0xff]
  %v1351 = vld [vmem:[%s11 + $0x48] sm:$0xff]
  %v1352 = vld [vmem:[%s11 + $0x50] sm:$0xff]
  %v1353 = vld [vmem:[%s11 + $0x58] sm:$0xff]
  %v1354 = vld [vmem:[%s11 + $0x60] sm:$0xff]
  %v1355 = vld [vmem:[%s11 + $0x68] sm:$0xff]
  %v1356 = vld [vmem:[%s11 + $0x70] sm:$0xff]
  %v1357 = vld [vmem:[%s11 + $0x78] sm:$0xff]
  %v1358 = vld [vmem:[%s11 + $0x80] sm:$0xff]
  %v1359 = vld [vmem:[%s11 + $0x88] sm:$0xff]
  %v1360 = vld [vmem:[%s11 + $0x90] sm:$0xff]
  %v1361 = vld [vmem:[%s11 + $0x98] sm:$0xff]
  %v1362 = vld [vmem:[%s11 + $0xa0] sm:$0xff]
  %v1363 = vld [vmem:[%s11 + $0xa8] sm:$0xff]
  %v1364 = vld [vmem:[%s11 + $0xb0] sm:$0xff]
  %v1365 = vld [vmem:[%s11 + $0xb8] sm:$0xff]
  %v1366 = vld [vmem:[%s11 + $0xc0] sm:$0xff]
  %v1367 = vld [vmem:[%s11 + $0xc8] sm:$0xff]
  %v1368 = vld [vmem:[%s11 + $0xd0] sm:$0xff]
  %v1369 = vld [vmem:[%s11 + $0xd8] sm:$0xff]
  %v1370 = vld [vmem:[%s11 + $0xe0] sm:$0xff]
  %v1371 = vld [vmem:[%s11 + $0xe8] sm:$0xff]
  %v1372 = vld [vmem:[%s11 + $0xf0] sm:$0xff]
  %v1373 = vld [vmem:[%s11 + $0xf8] sm:$0xff]
  %v1374 = vld [vmem:[%s12] sm:$0x1]
  %v1376 = vperm.slane %v1374, 0
  %1378 = vmatpush.msra.mxu0 %v1357
  %1379 = vmatpush.msra.mxu0 %v1356
  %1380 = vmatpush.msra.mxu0 %v1355
  %1381 = vmatpush.msra.mxu0 %v1354
  %1382 = vmatpush.msra.mxu0 %v1353
  %1383 = vmatpush.msra.mxu0 %v1352
  %1384 = vmatpush.msra.mxu0 %v1351
  %1385 = vmatpush.msra.mxu0 %v1350
  %1386 = vmatpush.msra.mxu0 %v1349
  %1387 = vmatpush.msra.mxu0 %v1348
  %1388 = vmatpush.msra.mxu0 %v1347
  %1389 = vmatpush.msra.mxu0 %v1346
  %1390 = vmatpush.msra.mxu0 %v1345
  %1391 = vmatpush.msra.mxu0 %v1344
  %1392 = vmatpush.msra.mxu0 %v1343
  %1393 = vmatpush.msra.mxu0 %v1342
  %1394 = vmatmul.f32.gmra.mxu0 %v1266
  %v1395 = vpop.f32.mrf.mxu0
  %v1396 = vadd.f32 %v1376, %v1395
  %1397 = vmatmul.f32.gmra.mxu0 %v1267
  %v1398 = vpop.f32.mrf.mxu0
  %v1399 = vadd.f32 %v1376, %v1398
  %1400 = vmatmul.f32.gmra.mxu0 %v1340
  %v1401 = vpop.f32.mrf.mxu0
  %v1402 = vadd.f32 %v1376, %v1401
  %1403 = vmatmul.f32.gmra.mxu0 %v1325
  %v1404 = vpop.f32.mrf.mxu0
  %v1405 = vadd.f32 %v1376, %v1404
  %1406 = vmatmul.f32.gmra.mxu0 %v1329
  %v1407 = vpop.f32.mrf.mxu0
  %v1408 = vadd.f32 %v1376, %v1407
  %1409 = vmatmul.f32.gmra.mxu0 %v1328
  %v1410 = vpop.f32.mrf.mxu0
  %v1411 = vadd.f32 %v1376, %v1410
  %1412 = vdwg.mxu0
  %1413 = vmatpush.msra.mxu0 %v1373
  %1414 = vmatpush.msra.mxu0 %v1372
  %1415 = vmatpush.msra.mxu0 %v1371
  %1416 = vmatpush.msra.mxu0 %v1370
  %1417 = vmatpush.msra.mxu0 %v1369
  %1418 = vmatpush.msra.mxu0 %v1368
  %1419 = vmatpush.msra.mxu0 %v1367
  %1420 = vmatpush.msra.mxu0 %v1366
  %1421 = vmatpush.msra.mxu0 %v1365
  %1422 = vmatpush.msra.mxu0 %v1364
  %1423 = vmatpush.msra.mxu0 %v1363
  %1424 = vmatpush.msra.mxu0 %v1362
  %1425 = vmatpush.msra.mxu0 %v1361
  %1426 = vmatpush.msra.mxu0 %v1360
  %1427 = vmatpush.msra.mxu0 %v1359
  %1428 = vmatpush.msra.mxu0 %v1358
  %1429 = vmatmul.f32.gmra.mxu0 %v1269
  %v1430 = vpop.f32.mrf.mxu0
  %v1431 = vadd.f32 %v1396, %v1430
  %1432 = vmatmul.f32.gmra.mxu0 %v1270
  %v1433 = vpop.f32.mrf.mxu0
  %v1434 = vadd.f32 %v1399, %v1433
  %1435 = vmatmul.f32.gmra.mxu0 %v1341
  %v1436 = vpop.f32.mrf.mxu0
  %v1437 = vadd.f32 %v1402, %v1436
  %1438 = vmatmul.f32.gmra.mxu0 %v1327
  %v1439 = vpop.f32.mrf.mxu0
  %v1440 = vadd.f32 %v1405, %v1439
  %1441 = vmatmul.f32.gmra.mxu0 %v1331
  %v1442 = vpop.f32.mrf.mxu0
  %v1443 = vadd.f32 %v1408, %v1442
  %1444 = vmatmul.f32.gmra.mxu0 %v1330
  %v1445 = vpop.f32.mrf.mxu0
  %v1446 = vadd.f32 %v1411, %v1445
  %1447 = vdwg.mxu0
  %v1451 = vrot.slane %v1431, 5
  %v1452 = vrot.slane %v1434, 5
  %v1453 = vsel %vm763, %v1451, %v1452
  %v1454 = vrot.slane %v1437, 5
  %v1455 = vsel %vm763, %v1452, %v1454
  %v1459 = vsel %vm763, 0.0, %v1451
  %v1463 = vrot.slane %v1437, 2
  %v1464 = vrot.slane %v1440, 2
  %v1465 = vsel %vm75, %v1463, %v1464
  %v1466 = vrot.slane %v1443, 2
  %v1467 = vsel %vm75, %v1464, %v1466
  %v1468 = vrot.slane %v1446, 2
  %v1469 = vsel %vm75, %v1466, %v1468
  %v1473 = vsel %vm763, 0.0, %v1465
  %v1475 = vrot.slane %v1459, 1
  %v1476 = vrot.slane %v1453, 1
  %v1477 = vsel %vm60, %v1475, %v1476
  %v1478 = vrot.slane %v1455, 1
  %v1479 = vsel %vm60, %v1476, %v1478
  %v1480 = vsel %vm60, %v1478, %v780
  %1481 = vrot.lane.b32.xlu0 %v1477, 32
  %v1482 = vpop.permute.xlu0 %1481
  %1483 = vrot.lane.b32.xlu0 %v1479, 32
  %v1484 = vpop.permute.xlu0 %1483
  %1485 = vrot.lane.b32.xlu0 %v1480, 32
  %v1486 = vpop.permute.xlu0 %1485
  %v1490 = vrot.slane %v1459, 2
  %v1491 = vrot.slane %v1453, 2
  %v1492 = vsel %vm75, %v1490, %v1491
  %v1493 = vrot.slane %v1455, 2
  %v1494 = vsel %vm75, %v1491, %v1493
  %v1495 = vrot.slane 0.0, 2
  %v1496 = vsel %vm75, %v1493, %v1495
  %1497 = vrot.lane.b32.xlu0 %v1492, 64
  %v1498 = vpop.permute.xlu0 %1497
  %1499 = vrot.lane.b32.xlu0 %v1494, 64
  %v1500 = vpop.permute.xlu0 %1499
  %1501 = vrot.lane.b32.xlu0 %v1496, 64
  %v1502 = vpop.permute.xlu0 %1501
  %v1506 = vrot.slane %v1459, 3
  %v1507 = vrot.slane %v1453, 3
  %v1508 = vsel %vm90, %v1506, %v1507
  %v1509 = vrot.slane %v1455, 3
  %v1510 = vsel %vm90, %v1507, %v1509
  %v1511 = vrot.slane 0.0, 3
  %v1512 = vsel %vm90, %v1509, %v1511
  %1513 = vrot.lane.b32.xlu0 %v1508, 96
  %v1514 = vpop.permute.xlu0 %1513
  %1515 = vrot.lane.b32.xlu0 %v1510, 96
  %v1516 = vpop.permute.xlu0 %1515
  %1517 = vrot.lane.b32.xlu0 %v1512, 96
  %v1518 = vpop.permute.xlu0 %1517
  %v1522 = vsel %vm291, %v1459, %v1482
  %v1523 = vsel %vm291, %v1453, %v1484
  %v1524 = vsel %vm291, %v1455, %v1486
  %v1525 = vsel %vm295, %v1522, %v1498
  %v1526 = vsel %vm295, %v1523, %v1500
  %v1527 = vsel %vm295, %v1524, %v1502
  %v1528 = vsel %vm299, %v1525, %v1514
  %v1529 = vsel %vm299, %v1526, %v1516
  %v1530 = vsel %vm299, %v1527, %v1518
  %v1532 = vrot.slane %v1473, 1
  %v1533 = vrot.slane %v1467, 1
  %v1534 = vsel %vm60, %v1532, %v1533
  %v1535 = vrot.slane %v1469, 1
  %v1536 = vsel %vm60, %v1533, %v1535
  %v1537 = vsel %vm60, %v1535, %v780
  %1538 = vrot.lane.b32.xlu0 %v1534, 32
  %v1539 = vpop.permute.xlu0 %1538
  %1540 = vrot.lane.b32.xlu0 %v1536, 32
  %v1541 = vpop.permute.xlu0 %1540
  %1542 = vrot.lane.b32.xlu0 %v1537, 32
  %v1543 = vpop.permute.xlu0 %1542
  %v1547 = vrot.slane %v1473, 2
  %v1548 = vrot.slane %v1467, 2
  %v1549 = vsel %vm75, %v1547, %v1548
  %v1550 = vrot.slane %v1469, 2
  %v1551 = vsel %vm75, %v1548, %v1550
  %v1552 = vsel %vm75, %v1550, %v1495
  %1553 = vrot.lane.b32.xlu0 %v1549, 64
  %v1554 = vpop.permute.xlu0 %1553
  %1555 = vrot.lane.b32.xlu0 %v1551, 64
  %v1556 = vpop.permute.xlu0 %1555
  %1557 = vrot.lane.b32.xlu0 %v1552, 64
  %v1558 = vpop.permute.xlu0 %1557
  %v1562 = vrot.slane %v1473, 3
  %v1563 = vrot.slane %v1467, 3
  %v1564 = vsel %vm90, %v1562, %v1563
  %v1565 = vrot.slane %v1469, 3
  %v1566 = vsel %vm90, %v1563, %v1565
  %v1567 = vsel %vm90, %v1565, %v1511
  %1568 = vrot.lane.b32.xlu0 %v1564, 96
  %v1569 = vpop.permute.xlu0 %1568
  %1570 = vrot.lane.b32.xlu0 %v1566, 96
  %v1571 = vpop.permute.xlu0 %1570
  %1572 = vrot.lane.b32.xlu0 %v1567, 96
  %v1573 = vpop.permute.xlu0 %1572
  %v1577 = vsel %vm291, %v1473, %v1539
  %v1578 = vsel %vm291, %v1467, %v1541
  %v1579 = vsel %vm291, %v1469, %v1543
  %v1580 = vsel %vm295, %v1577, %v1554
  %v1581 = vsel %vm295, %v1578, %v1556
  %v1582 = vsel %vm295, %v1579, %v1558
  %v1583 = vsel %vm299, %v1580, %v1569
  %v1584 = vsel %vm299, %v1581, %v1571
  %v1585 = vsel %vm299, %v1582, %v1573
  %v1586 = vld [vmem:[%s13] sm:$0xff]
  %v1587 = vld [vmem:[%s13 + $0x8] sm:$0xff]
  %v1588 = vld [vmem:[%s13 + $0x10] sm:$0xff]
  %v1589 = vld [vmem:[%s13 + $0x18] sm:$0xff]
  %v1590 = vld [vmem:[%s13 + $0x20] sm:$0xff]
  %v1591 = vld [vmem:[%s13 + $0x28] sm:$0xff]
  %v1592 = vld [vmem:[%s13 + $0x30] sm:$0xff]
  %v1593 = vld [vmem:[%s13 + $0x38] sm:$0xff]
  %v1594 = vld [vmem:[%s13 + $0x40] sm:$0xff]
  %v1595 = vld [vmem:[%s13 + $0x48] sm:$0xff]
  %v1596 = vld [vmem:[%s13 + $0x50] sm:$0xff]
  %v1597 = vld [vmem:[%s13 + $0x58] sm:$0xff]
  %v1598 = vld [vmem:[%s13 + $0x60] sm:$0xff]
  %v1599 = vld [vmem:[%s13 + $0x68] sm:$0xff]
  %v1600 = vld [vmem:[%s13 + $0x70] sm:$0xff]
  %v1601 = vld [vmem:[%s13 + $0x78] sm:$0xff]
  %v1602 = vld [vmem:[%s14] sm:$0x1]
  %v1604 = vperm.slane %v1602, 0
  %1606 = vmatpush.msra.mxu0 %v1601
  %1607 = vmatpush.msra.mxu0 %v1600
  %1608 = vmatpush.msra.mxu0 %v1599
  %1609 = vmatpush.msra.mxu0 %v1598
  %1610 = vmatpush.msra.mxu0 %v1597
  %1611 = vmatpush.msra.mxu0 %v1596
  %1612 = vmatpush.msra.mxu0 %v1595
  %1613 = vmatpush.msra.mxu0 %v1594
  %1614 = vmatpush.msra.mxu0 %v1593
  %1615 = vmatpush.msra.mxu0 %v1592
  %1616 = vmatpush.msra.mxu0 %v1591
  %1617 = vmatpush.msra.mxu0 %v1590
  %1618 = vmatpush.msra.mxu0 %v1589
  %1619 = vmatpush.msra.mxu0 %v1588
  %1620 = vmatpush.msra.mxu0 %v1587
  %1621 = vmatpush.msra.mxu0 %v1586
  %1622 = vmatmul.f32.gmra.mxu0 %v1528
  %v1623 = vpop.f32.mrf.mxu0
  %v1624 = vadd.f32 %v1604, %v1623
  %1625 = vmatmul.f32.gmra.mxu0 %v1529
  %v1626 = vpop.f32.mrf.mxu0
  %v1627 = vadd.f32 %v1604, %v1626
  %1628 = vmatmul.f32.gmra.mxu0 %v1530
  %v1629 = vpop.f32.mrf.mxu0
  %v1630 = vadd.f32 %v1604, %v1629
  %1631 = vmatmul.f32.gmra.mxu0 %v1583
  %v1632 = vpop.f32.mrf.mxu0
  %v1633 = vadd.f32 %v1604, %v1632
  %1634 = vmatmul.f32.gmra.mxu0 %v1584
  %v1635 = vpop.f32.mrf.mxu0
  %v1636 = vadd.f32 %v1604, %v1635
  %1637 = vmatmul.f32.gmra.mxu0 %v1585
  %v1638 = vpop.f32.mrf.mxu0
  %v1639 = vadd.f32 %v1604, %v1638
  %1640 = vdwg.mxu0
  %1641 = vst.msk [vmem:[%s15] sm:$0xff] %vm105, %v1624
  %1642 = vst.msk [vmem:[%s15 + $0x8] sm:$0xff] %vm105, %v1627
  %1643 = vst.msk [vmem:[%s15 + $0x10] sm:$0xff] %vm105, %v1630
  %s1644 = scalar_lea.vmem %s15, 24
  %1645 = vst.msk [vmem:[%s1644] sm:$0xff] %vm105, %v1633
  %1646 = vst.msk [vmem:[%s1644 + $0x8] sm:$0xff] %vm105, %v1636
  %1647 = vst.msk [vmem:[%s1644 + $0x10] sm:$0xff] %vm105, %v1639
  // Predicated region
  $region62: #{audio_encoder_forward.1} parent=0 // pred_check
    _
  $region63: #{audio_encoder_forward.1} parent=0 // pred_check_branch
    %1649 = sbr.rel (0) target = $region65
  $region64: #{audio_encoder_forward.1} parent=0 // pred_region
    _
  $region65: #{audio_encoder_forward.1} parent=0 // pred_fallthru
    _
  // Predicated region
  $region66: #{audio_encoder_forward.1} parent=0 // pred_check
    _
  $region67: #{audio_encoder_forward.1} parent=0 // pred_check_branch
    %1651 = sbr.rel (0) target = $region69
  $region68: #{audio_encoder_forward.1} parent=0 // pred_region
    _
  $region69: #{audio_encoder_forward.1} parent=0 // pred_fallthru
    _

</llo_original>
